<compile_context>
chip_gen: v7x
topology: tpu7x:2x2x1
jax: 0.10.0
libtpu: 0.0.40
codegen_flags: <defaults>
</compile_context>

<pallas_src>
import functools

import jax
import jax.numpy as jnp
from jax import lax
from jax.experimental import pallas as pl
from jax.experimental.pallas import tpu as pltpu


_LANE = 128
_MAX_BANK_TILE = 4096          # multiple of 256: MXU-friendly on v6e/v7x, 128 on v5e


def _round_up(x, m):
    return ((x + m - 1) // m) * m


def _tpu_vmem_bytes():
    try:
        info = pltpu.get_tpu_info()
        v = getattr(info, "vmem_capacity_bytes", None)
        if v:
            return int(v)
    except Exception:
        pass
    return 64 * 1024 * 1024    # conservative fallback (v7x per-TC VMEM)


def _vmem_limit_bytes():
    # ~96 MiB on v5e/v6e (128 MiB physical), ~48 MiB on v7x (64 MiB physical).
    return int(_tpu_vmem_bytes() * 3 // 4)


def _pick_bank_tile(bank, per_col_bytes, fixed_bytes=0):
    """Largest lane-aligned bank tile that fits comfortably in VMEM.

    Prefers divisors of the (128-aligned) bank so the grid has no ragged
    block, and keeps >= 4 grid steps (v7x megacore) when that still allows a
    >=1024-wide tile.
    """
    budget = int(_tpu_vmem_bytes() * 0.55) - fixed_bytes
    tn_max = max(_LANE, budget // max(per_col_bytes, 1))
    bank_al = _round_up(bank, _LANE)
    tn_max = min(tn_max, _MAX_BANK_TILE, bank_al)
    cands = (4096, 3072, 2048, 1536, 1024, 768, 512, 384, 256, 128)
    divisors = [c for c in cands if c <= tn_max and bank_al % c == 0]
    for c in divisors:                      # big tile AND >= 4 steps, if possible
        if c >= 1024 and bank_al // c >= 4:
            return c
    if divisors:
        return divisors[0]
    # ragged last block: OOB reads are garbage but the OOB writes are masked.
    return max(_LANE, (tn_max // _LANE) * _LANE)


# ---------------------------------------------------------------------------
# forward:  memory_bank = normalize(W, dim=0);  logit = q @ memory_bank
# fused into one pallas_call, tiled over the bank (negatives) axis.
# ---------------------------------------------------------------------------
def _normalize_tile(w_ref):
    w = w_ref[...].astype(jnp.float32)                       # (dim, tn)
    ssq = jnp.sum(w * w, axis=0, keepdims=True)               # (1, tn)
    # F.normalize(dim=0, eps=1e-12):  1 / max(||w||, 1e-12) == rsqrt(max(ssq, 1e-24))
    return w * lax.rsqrt(jnp.maximum(ssq, 1e-24))


def _forward_kernel_mb(q_ref, w_ref, mb_ref, logit_ref):
    wn = _normalize_tile(w_ref)
    mb_ref[...] = wn.astype(mb_ref.dtype)
    logit_ref[...] = jnp.dot(
        q_ref[...].astype(jnp.float32), wn,
        preferred_element_type=jnp.float32,
        precision=lax.Precision.HIGHEST).astype(logit_ref.dtype)


def _forward_kernel_logit(q_ref, w_ref, logit_ref):
    wn = _normalize_tile(w_ref)
    logit_ref[...] = jnp.dot(
        q_ref[...].astype(jnp.float32), wn,
        preferred_element_type=jnp.float32,
        precision=lax.Precision.HIGHEST).astype(logit_ref.dtype)


@functools.lru_cache(maxsize=None)
def _forward_call(n, dim, bank, tn, q_dt, w_dt, o_dt, want_mb, vmem_limit):
    w_dt = jnp.dtype(w_dt)
    o_dt = jnp.dtype(o_dt)
    del q_dt  # dtype comes from the actual operand; kept only in the cache key
    in_specs = [
        pl.BlockSpec((n, dim), lambda j: (0, 0)),             # q: VMEM resident
        pl.BlockSpec((dim, tn), lambda j: (0, j)),            # W: streamed tiles
    ]
    logit_spec = pl.BlockSpec((n, tn), lambda j: (0, j))
    logit_shape = jax.ShapeDtypeStruct((n, bank), o_dt)
    if want_mb:
        kernel = _forward_kernel_mb
        out_specs = [pl.BlockSpec((dim, tn), lambda j: (0, j)), logit_spec]
        out_shape = [jax.ShapeDtypeStruct((dim, bank), w_dt), logit_shape]
    else:
        kernel = _forward_kernel_logit
        out_specs = logit_spec
        out_shape = logit_shape
    return pl.pallas_call(
        kernel,
        grid=(pl.cdiv(bank, tn),),
        in_specs=in_specs,
        out_specs=out_specs,
        out_shape=out_shape,
        compiler_params=pltpu.CompilerParams(
            dimension_semantics=("parallel",),
            vmem_limit_bytes=vmem_limit,
        ),
    )


def _forward_single(W, q, want_mb):
    dim, bank = W.shape
    n = q.shape[0]
    w_dt = jnp.dtype(W.dtype)
    q_dt = jnp.dtype(q.dtype)
    o_dt = jnp.dtype(jnp.promote_types(q_dt, w_dt))
    # double-buffered per-column VMEM cost: W tile (+ mb tile) + logit tile
    per_col = 2 * (dim * w_dt.itemsize
                   + (dim * w_dt.itemsize if want_mb else 0)
                   + n * o_dt.itemsize)
    fixed = 2 * n * dim * q_dt.itemsize + 4 * n * dim        # resident q + f32 upcast
    tn = _pick_bank_tile(bank, per_col, fixed)
    call = _forward_call(int(n), int(dim), int(bank), int(tn),
                         str(q_dt), str(w_dt), str(o_dt),
                         bool(want_mb), int(_vmem_limit_bytes()))
    if want_mb:
        mb, logit = call(q, W)
        return mb, logit
    return None, call(q, W)


def adversary_negatives_forward(W, q, *, multi_crop=0, init_mem=False,
                                want_memory_bank=True):
    """Pallas port of Adversary_Negatives.forward -> (memory_bank, W, logit).

    want_memory_bank=False skips writing the normalized bank back to HBM when
    the caller only needs logits (memory_bank slot is returned as None).
    """
    if multi_crop and not init_mem:
        q_list = list(q)
        sizes = [int(qi.shape[0]) for qi in q_list]
        q_cat = jnp.concatenate(q_list, axis=0)       # one bank stream for all crops
        mb, logit_cat = _forward_single(W, q_cat, want_memory_bank)
        logits, off = [], 0
        for s in sizes:
            logits.append(logit_cat[off:off + s])
            off += s
        return mb, W, logits
    mb, logit = _forward_single(W, q, want_memory_bank)
    return mb, W, logit


# ---------------------------------------------------------------------------
# update:  g += wd*W ; v = m*v + g ; W = W - lr*v      (in-place via aliasing)
# ---------------------------------------------------------------------------
def _update_kernel(s_ref, w_ref, v_ref, g_ref, w_out_ref, v_out_ref):
    m, lr, wd = s_ref[0], s_ref[1], s_ref[2]
    w = w_ref[...].astype(jnp.float32)
    v_new = m * v_ref[...].astype(jnp.float32) + (g_ref[...].astype(jnp.float32) + wd * w)
    v_out_ref[...] = v_new.astype(v_out_ref.dtype)
    w_out_ref[...] = (w - lr * v_new).astype(w_out_ref.dtype)


@functools.lru_cache(maxsize=None)
def _update_call(dim, bank, tn, dt, vmem_limit):
    dt = jnp.dtype(dt)
    tile = pl.BlockSpec((dim, tn), lambda j: (0, j))
    return pl.pallas_call(
        _update_kernel,
        grid=(pl.cdiv(bank, tn),),
        in_specs=[pl.BlockSpec(memory_space=pltpu.MemorySpace.SMEM),  # (m, lr, wd)
                  tile, tile, tile],
        out_specs=[tile, tile],
        out_shape=[jax.ShapeDtypeStruct((dim, bank), dt),
                   jax.ShapeDtypeStruct((dim, bank), dt)],
        input_output_aliases={1: 0, 2: 1},     # W -> W_new, v -> v_new in place
        compiler_params=pltpu.CompilerParams(
            dimension_semantics=("parallel",),
            vmem_limit_bytes=vmem_limit,
        ),
    )


def adversary_negatives_update(W, v, g, *, m, lr, weight_decay):
    """v = m*v + (g + wd*W); W = W - lr*v.  Tiled, aliased (in-place) update.

    NOTE: wrap the caller in jax.jit with donate_argnums for W and v so the
    aliasing is truly in place; otherwise XLA inserts defensive copies.
    """
    dim, bank = W.shape
    dt = jnp.dtype(W.dtype)
    v = v.astype(dt)
    g = g.astype(dt)
    per_col = 2 * 5 * dim * dt.itemsize        # W,v,g in + W,v out, double-buffered
    tn = _pick_bank_tile(bank, per_col)
    scal = jnp.array([m, lr, weight_decay], dtype=jnp.float32)
    W_new, v_new = _update_call(int(dim), int(bank), int(tn), str(dt),
                                int(_vmem_limit_bytes()))(scal, W, v, g)
    return W_new, v_new


# ---------------------------------------------------------------------------
# main
# ---------------------------------------------------------------------------
if __name__ == "__main__":
    key = jax.random.PRNGKey(0)
    k_w, k_q1, k_q2, k_g = jax.random.split(key, 4)

    dim, bank_size, batch = 32, 1024, 8

    W = jax.random.normal(k_w, (dim, bank_size), jnp.float32)
    v = jnp.zeros((dim, bank_size), jnp.float32)
    q = jax.random.normal(k_q1, (batch, dim), jnp.float32)

    # ---- forward (default single-crop branch) ----
    memory_bank, W_out, logit = adversary_negatives_forward(W, q)
    jax.block_until_ready((memory_bank, logit))

    col_norm = jnp.maximum(jnp.sqrt(jnp.sum(W * W, axis=0, keepdims=True)), 1e-12)
    mb_ref = W / col_norm
    logit_ref = jnp.einsum("nc,ck->nk", q, mb_ref,
                           precision=jax.lax.Precision.HIGHEST)

    assert memory_bank.shape == (dim, bank_size)
    assert logit.shape == (batch, bank_size)
    assert float(jnp.max(jnp.abs(memory_bank - mb_ref))) < 1e-4
    assert float(jnp.max(jnp.abs(
        jnp.linalg.norm(memory_bank, axis=0) - 1.0))) < 1e-4
    assert bool(jnp.allclose(logit, logit_ref, atol=2e-2, rtol=1e-2))

    # ---- forward, logits-only path (skips the memory_bank HBM write) ----
    mb_none, _, logit_nb = adversary_negatives_forward(W, q, want_memory_bank=False)
    jax.block_until_ready(logit_nb)
    assert mb_none is None
    assert bool(jnp.allclose(logit_nb, logit, atol=1e-5))

    # ---- forward (multi-crop branch: list of query tensors) ----
    q2 = jax.random.normal(k_q2, (batch, dim), jnp.float32)
    mb_mc, _, logit_list = adversary_negatives_forward(W, [q, q2], multi_crop=2)
    jax.block_until_ready(logit_list)
    assert len(logit_list) == 2
    logit2_ref = jnp.einsum("nc,ck->nk", q2, mb_ref,
                            precision=jax.lax.Precision.HIGHEST)
    assert bool(jnp.allclose(logit_list[0], logit, atol=1e-4))
    assert bool(jnp.allclose(logit_list[1], logit2_ref, atol=2e-2, rtol=1e-2))

    # ---- update (in-place, aliased buffers) ----
    # references computed BEFORE the call: W/v feed the aliased kernel.
    g = jax.random.normal(k_g, (dim, bank_size), jnp.float32)
    m_, lr_, wd_ = 0.9, 3.0, 1e-4
    v_exp = m_ * v + (g + wd_ * W)
    W_exp = W - lr_ * v_exp
    W_new, v_new = adversary_negatives_update(W, v, g, m=m_, lr=lr_,
                                              weight_decay=wd_)
    jax.block_until_ready((W_new, v_new))
    assert float(jnp.max(jnp.abs(W_new - W_exp))) < 1e-4
    assert float(jnp.max(jnp.abs(v_new - v_exp))) < 1e-4

    # TODO(synk): print_weight() is a host-side debug print (sum of W); not a kernel.
    print("KERNEL_OK")
</pallas_src>

<mosaic_0001>
module attributes {stable_mosaic.version = 11 : i64} {
  func.func @_forward_kernel_mb(%arg0: i32, %arg1: memref<8x32xf32, #tpu.memory_space<vmem>>, %arg2: memref<32x1024xf32, #tpu.memory_space<vmem>>, %arg3: memref<32x1024xf32, #tpu.memory_space<vmem>>, %arg4: memref<8x1024xf32, #tpu.memory_space<vmem>>) attributes {dimension_semantics = [#tpu.dimension_semantics<parallel>], iteration_bounds = array<i64: 1>, scalar_prefetch = 0 : i64, scratch_operands = 0 : i64, tpu.core_type = #tpu.core_type<tc>, window_params = [{pipeline_mode = #tpu.pipeline_mode<synchronous>, transform_indices = @transform_0, window_bounds = array<i64: 8, 32>}, {transform_indices = @transform_1, window_bounds = array<i64: 32, 1024>}, {transform_indices = @transform_2, window_bounds = array<i64: 32, 1024>}, {transform_indices = @transform_3, window_bounds = array<i64: 8, 1024>}]} {
    %c0 = arith.constant 0 : index
    %c0_0 = arith.constant 0 : index
    %0 = vector.load %arg2[%c0, %c0_0] : memref<32x1024xf32, #tpu.memory_space<vmem>>, vector<32x1024xf32>
    %1 = arith.mulf %0, %0 : vector<32x1024xf32>
    %cst = arith.constant dense<0.000000e+00> : vector<1024xf32>
    %2 = vector.multi_reduction <add>, %1, %cst [0] : vector<32x1024xf32> to vector<1024xf32>
    %3 = vector.shape_cast %2 : vector<1024xf32> to vector<1x1024xf32>
    %cst_1 = arith.constant 1.000000e-24 : f32
    %4 = vector.broadcast %cst_1 : f32 to vector<1x1024xf32>
    %5 = arith.maximumf %3, %4 : vector<1x1024xf32>
    %6 = math.rsqrt %5 : vector<1x1024xf32>
    %7 = vector.broadcast %6 : vector<1x1024xf32> to vector<32x1024xf32>
    %8 = arith.mulf %0, %7 : vector<32x1024xf32>
    %c0_2 = arith.constant 0 : index
    %c0_3 = arith.constant 0 : index
    %9 = vector.load %arg3[%c0_2, %c0_3] : memref<32x1024xf32, #tpu.memory_space<vmem>>, vector<32x1024xf32>
    tpu.vector_store %arg3[%c0_2, %c0_3], %8 {strides = array<i32>} : memref<32x1024xf32, #tpu.memory_space<vmem>>, vector<32x1024xf32>,
    %c0_4 = arith.constant 0 : index
    %c0_5 = arith.constant 0 : index
    %10 = vector.load %arg1[%c0_4, %c0_5] : memref<8x32xf32, #tpu.memory_space<vmem>>, vector<8x32xf32>
    %cst_6 = arith.constant dense<0.000000e+00> : vector<8x1024xf32>
    %11 = tpu.matmul %10, %8, %cst_6 {dimension_numbers = #tpu.dot_dimension_numbers<[1], [0], [0], [1], [0, 0, 1, 1], [], []>, precision = #tpu.contract_precision<fp32>} : vector<8x32xf32>, vector<32x1024xf32>, vector<8x1024xf32> -> vector<8x1024xf32>
    %c0_7 = arith.constant 0 : index
    %c0_8 = arith.constant 0 : index
    %12 = vector.load %arg4[%c0_7, %c0_8] : memref<8x1024xf32, #tpu.memory_space<vmem>>, vector<8x1024xf32>
    tpu.vector_store %arg4[%c0_7, %c0_8], %11 {strides = array<i32>} : memref<8x1024xf32, #tpu.memory_space<vmem>>, vector<8x1024xf32>,
    return
  }
  func.func @transform_0(%arg0: i32) -> (i32, i32) {
    %c0_i32 = arith.constant 0 : i32
    %c0_i32_0 = arith.constant 0 : i32
    %c0_i32_1 = arith.constant 0 : i32
    return %c0_i32, %c0_i32_0 : i32, i32
  }
  func.func @transform_1(%arg0: i32) -> (i32, i32) {
    %c0_i32 = arith.constant 0 : i32
    %c0_i32_0 = arith.constant 0 : i32
    return %c0_i32, %arg0 : i32, i32
  }
  func.func @transform_2(%arg0: i32) -> (i32, i32) {
    %c0_i32 = arith.constant 0 : i32
    %c0_i32_0 = arith.constant 0 : i32
    return %c0_i32, %arg0 : i32, i32
  }
  func.func @transform_3(%arg0: i32) -> (i32, i32) {
    %c0_i32 = arith.constant 0 : i32
    %c0_i32_0 = arith.constant 0 : i32
    return %c0_i32, %arg0 : i32, i32
  }
}

</mosaic_0001>

<llo_original>
// kernel: tpu_custom_call.1
$region0: #{tpu_custom_call.1}
  #allocation0 [shape = 'u32[]', space=smem, size = 0x4, offset = 0x4, fixed_abs, tag = 'smem constant byte address 0x4 - core index']
  #allocation1 [shape = 'u32[144,128]{1,0:T(1,128)}', space=vmem, size = 0x12000, scoped, tag = 'internal scratch']
  %s0 = inlined_call_operand.hbm [shape: f32[8,32], index: 0, kind: input, shape index: {}]
  %s1 = inlined_call_operand.hbm [shape: f32[32,1024], index: 1, kind: input, shape index: {}]
  %s2 = inlined_call_operand.hbm [shape: f32[32,1024], index: 2, kind: output, shape index: {0}]
  %s3 = inlined_call_operand.hbm [shape: f32[8,1024], index: 3, kind: output, shape index: {1}]
  %4 = xla_tuple %s2, %s3
  %s5 = sld [smem:[#allocation0]]
  $region34: #{tpu_custom_call.1} parent=0
    _
  %s7 = ssub.s32 1, %s5
  %s8 = scalar_select 0, %s7, %s5
  $region1: #{tpu_custom_call.1} parent=0
    #allocation2 [shape = 'u8[4096]{0}', space=vmem, size = 0x1000, scoped, tag = 'input window, operand 0, single buffered']
    #allocation3 [shape = 's32[1]{0}', space=sflag, size = 0x4, scoped, tag = 'scoped memory for tpu_custom_call.1']
    #allocation4 [shape = 's32[1]{0}', space=sflag, size = 0x4, scoped, tag = 'scoped memory for tpu_custom_call.1']
    #allocation5 [shape = 'u8[131072]{0}', space=vmem, size = 0x20000, scoped, tag = 'input window, operand 1, single buffered']
    #allocation6 [shape = 's32[1]{0}', space=sflag, size = 0x4, scoped, tag = 'scoped memory for tpu_custom_call.1']
    #allocation7 [shape = 'u8[131072]{0}', space=vmem, size = 0x20000, scoped, tag = 'output window, operand 0, single buffered']
    #allocation8 [shape = 'u8[32768]{0}', space=vmem, size = 0x8000, scoped, tag = 'output window, operand 1, single buffered']
    #allocation9 [shape = 's32[1]{0}', space=sflag, size = 0x4, scoped, tag = 'scoped memory for tpu_custom_call.1']
    %9 = vsyncpa [#allocation3], 0
    %10 = vsyncpa [#allocation6], 0
    %11 = vsyncpa [#allocation4], 0
    %12 = vsyncpa [#allocation9], 0
    // Predicated region
    $region2: #{tpu_custom_call.1} parent=1 // pred_check
      _
    $region3: #{tpu_custom_call.1} parent=1 // pred_check_branch
      %14 = sbr.rel (0) target = $region5
    $region4: #{tpu_custom_call.1} parent=1 // pred_region
      %s16 = ssub.s32 128, 128
      %17 = vsyncadd [#allocation3], %s16
      %s19 = sshll.u32 [#allocation2], 4
      %s20 = int_to_ptr.vmem [resolvable:$true] %s19
      %22 = dma.hbm_to_vmem [thread:$0]  %s0, 128, %s20, [#allocation3]
    $region5: #{tpu_custom_call.1} parent=1 // pred_fallthru
      _
    // Predicated region
    $region6: #{tpu_custom_call.1} parent=1 // pred_check
      _
    $region7: #{tpu_custom_call.1} parent=1 // pred_check_branch
      %24 = sbr.rel (0) target = $region9
    $region8: #{tpu_custom_call.1} parent=1 // pred_region
      %s26 = ssub.s32 4096, 4096
      %27 = vsyncadd [#allocation6], %s26
      %s28 = sshll.u32 [#allocation5], 4
      %s29 = int_to_ptr.vmem [resolvable:$true] %s28
      %34 = dma.hbm_to_vmem [thread:$0]  %s1, 4096, %s29, [#allocation6], 1024, 1024, 64
    $region9: #{tpu_custom_call.1} parent=1 // pred_fallthru
      _
    // Predicated region
    $region10: #{tpu_custom_call.1} parent=1 // pred_check
      _
    $region11: #{tpu_custom_call.1} parent=1 // pred_check_branch
      %36 = sbr.rel (0) target = $region13
    $region12: #{tpu_custom_call.1} parent=1 // pred_region
      %37 = dma.done [#allocation3], 128
    $region13: #{tpu_custom_call.1} parent=1 // pred_fallthru
      _
    // Predicated region
    $region14: #{tpu_custom_call.1} parent=1 // pred_check
      _
    $region15: #{tpu_custom_call.1} parent=1 // pred_check_branch
      %39 = sbr.rel (0) target = $region17
    $region16: #{tpu_custom_call.1} parent=1 // pred_region
      %40 = dma.done [#allocation6], 4096
    $region17: #{tpu_custom_call.1} parent=1 // pred_fallthru
      _
    %v41 = vld [vmem:[#allocation5] sm:$0xff]
    %v42 = vld [vmem:[#allocation5 + $0x8] sm:$0xff]
    %v43 = vld [vmem:[#allocation5 + $0x10] sm:$0xff]
    %v44 = vld [vmem:[#allocation5 + $0x18] sm:$0xff]
    %v45 = vld [vmem:[#allocation5 + $0x20] sm:$0xff]
    %v46 = vld [vmem:[#allocation5 + $0x28] sm:$0xff]
    %v47 = vld [vmem:[#allocation5 + $0x30] sm:$0xff]
    %v48 = vld [vmem:[#allocation5 + $0x38] sm:$0xff]
    %v49 = vld [vmem:[#allocation5 + $0x40] sm:$0xff]
    %v50 = vld [vmem:[#allocation5 + $0x48] sm:$0xff]
    %v51 = vld [vmem:[#allocation5 + $0x50] sm:$0xff]
    %v52 = vld [vmem:[#allocation5 + $0x58] sm:$0xff]
    %v53 = vld [vmem:[#allocation5 + $0x60] sm:$0xff]
    %v54 = vld [vmem:[#allocation5 + $0x68] sm:$0xff]
    %v55 = vld [vmem:[#allocation5 + $0x70] sm:$0xff]
    %v56 = vld [vmem:[#allocation5 + $0x78] sm:$0xff]
    %v57 = vld [vmem:[#allocation5 + $0x80] sm:$0xff]
    %v58 = vld [vmem:[#allocation5 + $0x88] sm:$0xff]
    %v59 = vld [vmem:[#allocation5 + $0x90] sm:$0xff]
    %v60 = vld [vmem:[#allocation5 + $0x98] sm:$0xff]
    %v61 = vld [vmem:[#allocation5 + $0xa0] sm:$0xff]
    %v62 = vld [vmem:[#allocation5 + $0xa8] sm:$0xff]
    %v63 = vld [vmem:[#allocation5 + $0xb0] sm:$0xff]
    %v64 = vld [vmem:[#allocation5 + $0xb8] sm:$0xff]
    %v65 = vld [vmem:[#allocation5 + $0xc0] sm:$0xff]
    %v66 = vld [vmem:[#allocation5 + $0xc8] sm:$0xff]
    %v67 = vld [vmem:[#allocation5 + $0xd0] sm:$0xff]
    %v68 = vld [vmem:[#allocation5 + $0xd8] sm:$0xff]
    %v69 = vld [vmem:[#allocation5 + $0xe0] sm:$0xff]
    %v70 = vld [vmem:[#allocation5 + $0xe8] sm:$0xff]
    %v71 = vld [vmem:[#allocation5 + $0xf0] sm:$0xff]
    %v72 = vld [vmem:[#allocation5 + $0xf8] sm:$0xff]
    %v73 = vmul.f32 %v41, %v41
    %v74 = vmul.f32 %v42, %v42
    %v75 = vmul.f32 %v43, %v43
    %v76 = vmul.f32 %v44, %v44
    %v77 = vmul.f32 %v45, %v45
    %v78 = vmul.f32 %v46, %v46
    %v79 = vmul.f32 %v47, %v47
    %v80 = vmul.f32 %v48, %v48
    %v81 = vmul.f32 %v49, %v49
    %v82 = vmul.f32 %v50, %v50
    %v83 = vmul.f32 %v51, %v51
    %v84 = vmul.f32 %v52, %v52
    %v85 = vmul.f32 %v53, %v53
    %v86 = vmul.f32 %v54, %v54
    %v87 = vmul.f32 %v55, %v55
    %v88 = vmul.f32 %v56, %v56
    %v89 = vmul.f32 %v57, %v57
    %v90 = vmul.f32 %v58, %v58
    %v91 = vmul.f32 %v59, %v59
    %v92 = vmul.f32 %v60, %v60
    %v93 = vmul.f32 %v61, %v61
    %v94 = vmul.f32 %v62, %v62
    %v95 = vmul.f32 %v63, %v63
    %v96 = vmul.f32 %v64, %v64
    %v97 = vmul.f32 %v65, %v65
    %v98 = vmul.f32 %v66, %v66
    %v99 = vmul.f32 %v67, %v67
    %v100 = vmul.f32 %v68, %v68
    %v101 = vmul.f32 %v69, %v69
    %v102 = vmul.f32 %v70, %v70
    %v103 = vmul.f32 %v71, %v71
    %v104 = vmul.f32 %v72, %v72
    %v105 = vadd.f32 %v73, %v81
    %v106 = vadd.f32 %v105, %v89
    %v107 = vadd.f32 %v106, %v97
    %v108 = vrot.slane %v107, 4
    %v109 = vadd.f32 %v107, %v108
    %v110 = vrot.slane %v109, 2
    %v111 = vadd.f32 %v109, %v110
    %v112 = vrot.slane %v111, 1
    %v113 = vadd.f32 %v111, %v112
    %v114 = vadd.f32 %v74, %v82
    %v115 = vadd.f32 %v114, %v90
    %v116 = vadd.f32 %v115, %v98
    %v117 = vrot.slane %v116, 4
    %v118 = vadd.f32 %v116, %v117
    %v119 = vrot.slane %v118, 2
    %v120 = vadd.f32 %v118, %v119
    %v121 = vrot.slane %v120, 1
    %v122 = vadd.f32 %v120, %v121
    %v123 = vadd.f32 %v75, %v83
    %v124 = vadd.f32 %v123, %v91
    %v125 = vadd.f32 %v124, %v99
    %v126 = vrot.slane %v125, 4
    %v127 = vadd.f32 %v125, %v126
    %v128 = vrot.slane %v127, 2
    %v129 = vadd.f32 %v127, %v128
    %v130 = vrot.slane %v129, 1
    %v131 = vadd.f32 %v129, %v130
    %v132 = vadd.f32 %v76, %v84
    %v133 = vadd.f32 %v132, %v92
    %v134 = vadd.f32 %v133, %v100
    %v135 = vrot.slane %v134, 4
    %v136 = vadd.f32 %v134, %v135
    %v137 = vrot.slane %v136, 2
    %v138 = vadd.f32 %v136, %v137
    %v139 = vrot.slane %v138, 1
    %v140 = vadd.f32 %v138, %v139
    %v141 = vadd.f32 %v77, %v85
    %v142 = vadd.f32 %v141, %v93
    %v143 = vadd.f32 %v142, %v101
    %v144 = vrot.slane %v143, 4
    %v145 = vadd.f32 %v143, %v144
    %v146 = vrot.slane %v145, 2
    %v147 = vadd.f32 %v145, %v146
    %v148 = vrot.slane %v147, 1
    %v149 = vadd.f32 %v147, %v148
    %v150 = vadd.f32 %v78, %v86
    %v151 = vadd.f32 %v150, %v94
    %v152 = vadd.f32 %v151, %v102
    %v153 = vrot.slane %v152, 4
    %v154 = vadd.f32 %v152, %v153
    %v155 = vrot.slane %v154, 2
    %v156 = vadd.f32 %v154, %v155
    %v157 = vrot.slane %v156, 1
    %v158 = vadd.f32 %v156, %v157
    %v159 = vadd.f32 %v79, %v87
    %v160 = vadd.f32 %v159, %v95
    %v161 = vadd.f32 %v160, %v103
    %v162 = vrot.slane %v161, 4
    %v163 = vadd.f32 %v161, %v162
    %v164 = vrot.slane %v163, 2
    %v165 = vadd.f32 %v163, %v164
    %v166 = vrot.slane %v165, 1
    %v167 = vadd.f32 %v165, %v166
    %v168 = vadd.f32 %v80, %v88
    %v169 = vadd.f32 %v168, %v96
    %v170 = vadd.f32 %v169, %v104
    %v171 = vrot.slane %v170, 4
    %v172 = vadd.f32 %v170, %v171
    %v173 = vrot.slane %v172, 2
    %v174 = vadd.f32 %v172, %v173
    %v175 = vrot.slane %v174, 1
    %v176 = vadd.f32 %v174, %v175
    %v177 = vmax.f32 %v113, 1e-24
    %v178 = vmax.f32 %v122, 1e-24
    %v179 = vmax.f32 %v131, 1e-24
    %v180 = vmax.f32 %v140, 1e-24
    %v181 = vmax.f32 %v149, 1e-24
    %v182 = vmax.f32 %v158, 1e-24
    %v183 = vmax.f32 %v167, 1e-24
    %v184 = vmax.f32 %v176, 1e-24
    %v185 = vrsqrt.pop %v177
    %v186 = vrsqrt.pop %v178
    %v187 = vrsqrt.pop %v179
    %v188 = vrsqrt.pop %v180
    %v189 = vrsqrt.pop %v181
    %v190 = vrsqrt.pop %v182
    %v191 = vrsqrt.pop %v183
    %v192 = vrsqrt.pop %v184
    %v193 = vmul.f32 %v41, %v185
    %v194 = vmul.f32 %v42, %v186
    %v195 = vmul.f32 %v43, %v187
    %v196 = vmul.f32 %v44, %v188
    %v197 = vmul.f32 %v45, %v189
    %v198 = vmul.f32 %v46, %v190
    %v199 = vmul.f32 %v47, %v191
    %v200 = vmul.f32 %v48, %v192
    %v201 = vmul.f32 %v49, %v185
    %v202 = vmul.f32 %v50, %v186
    %v203 = vmul.f32 %v51, %v187
    %v204 = vmul.f32 %v52, %v188
    %v205 = vmul.f32 %v53, %v189
    %v206 = vmul.f32 %v54, %v190
    %v207 = vmul.f32 %v55, %v191
    %v208 = vmul.f32 %v56, %v192
    %v209 = vmul.f32 %v57, %v185
    %v210 = vmul.f32 %v58, %v186
    %v211 = vmul.f32 %v59, %v187
    %v212 = vmul.f32 %v60, %v188
    %v213 = vmul.f32 %v61, %v189
    %v214 = vmul.f32 %v62, %v190
    %v215 = vmul.f32 %v63, %v191
    %v216 = vmul.f32 %v64, %v192
    %v217 = vmul.f32 %v65, %v185
    %v218 = vmul.f32 %v66, %v186
    %v219 = vmul.f32 %v67, %v187
    %v220 = vmul.f32 %v68, %v188
    %v221 = vmul.f32 %v69, %v189
    %v222 = vmul.f32 %v70, %v190
    %v223 = vmul.f32 %v71, %v191
    %v224 = vmul.f32 %v72, %v192
    %225 = vst [vmem:[#allocation7] sm:$0xff] %v193
    %226 = vst [vmem:[#allocation7 + $0x8] sm:$0xff] %v194
    %227 = vst [vmem:[#allocation7 + $0x10] sm:$0xff] %v195
    %228 = vst [vmem:[#allocation7 + $0x18] sm:$0xff] %v196
    %229 = vst [vmem:[#allocation7 + $0x20] sm:$0xff] %v197
    %230 = vst [vmem:[#allocation7 + $0x28] sm:$0xff] %v198
    %231 = vst [vmem:[#allocation7 + $0x30] sm:$0xff] %v199
    %232 = vst [vmem:[#allocation7 + $0x38] sm:$0xff] %v200
    %233 = vst [vmem:[#allocation7 + $0x40] sm:$0xff] %v201
    %234 = vst [vmem:[#allocation7 + $0x48] sm:$0xff] %v202
    %235 = vst [vmem:[#allocation7 + $0x50] sm:$0xff] %v203
    %236 = vst [vmem:[#allocation7 + $0x58] sm:$0xff] %v204
    %237 = vst [vmem:[#allocation7 + $0x60] sm:$0xff] %v205
    %238 = vst [vmem:[#allocation7 + $0x68] sm:$0xff] %v206
    %239 = vst [vmem:[#allocation7 + $0x70] sm:$0xff] %v207
    %240 = vst [vmem:[#allocation7 + $0x78] sm:$0xff] %v208
    %241 = vst [vmem:[#allocation7 + $0x80] sm:$0xff] %v209
    %242 = vst [vmem:[#allocation7 + $0x88] sm:$0xff] %v210
    %243 = vst [vmem:[#allocation7 + $0x90] sm:$0xff] %v211
    %244 = vst [vmem:[#allocation7 + $0x98] sm:$0xff] %v212
    %245 = vst [vmem:[#allocation7 + $0xa0] sm:$0xff] %v213
    %246 = vst [vmem:[#allocation7 + $0xa8] sm:$0xff] %v214
    %247 = vst [vmem:[#allocation7 + $0xb0] sm:$0xff] %v215
    %248 = vst [vmem:[#allocation7 + $0xb8] sm:$0xff] %v216
    %249 = vst [vmem:[#allocation7 + $0xc0] sm:$0xff] %v217
    %250 = vst [vmem:[#allocation7 + $0xc8] sm:$0xff] %v218
    %251 = vst [vmem:[#allocation7 + $0xd0] sm:$0xff] %v219
    %252 = vst [vmem:[#allocation7 + $0xd8] sm:$0xff] %v220
    %253 = vst [vmem:[#allocation7 + $0xe0] sm:$0xff] %v221
    %254 = vst [vmem:[#allocation7 + $0xe8] sm:$0xff] %v222
    %255 = vst [vmem:[#allocation7 + $0xf0] sm:$0xff] %v223
    %256 = vst [vmem:[#allocation7 + $0xf8] sm:$0xff] %v224
    %v257 = vld [vmem:[#allocation2] sm:$0xff]
    %vm258 = vcmask 261120
    %v260 = vsel %vm258, %v257, 0
    %v262 = vand.u32 %v194, 4294901760
    %263 = vmatprep.subr.mxu0 %v262
    %v264 = vand.u32 %v193, 4294901760
    %265 = vmatpush1.msra.mxu0 %v264
    %v266 = vand.u32 %v202, 4294901760
    %267 = vmatprep.subr.mxu0 %v266
    %v268 = vand.u32 %v201, 4294901760
    %269 = vmatpush1.msra.mxu0 %v268
    %v270 = vand.u32 %v210, 4294901760
    %271 = vmatprep.subr.mxu0 %v270
    %v272 = vand.u32 %v209, 4294901760
    %273 = vmatpush1.msra.mxu0 %v272
    %v274 = vand.u32 %v218, 4294901760
    %275 = vmatprep.subr.mxu0 %v274
    %v276 = vand.u32 %v217, 4294901760
    %277 = vmatpush1.msra.mxu0 %v276
    %278 = vmatprep.subr.mxu0 0.0
    %279 = vmatpush1.msra.mxu0 0.0
    %280 = vmatprep.subr.mxu0 0.0
    %281 = vmatpush1.msra.mxu0 0.0
    %282 = vmatprep.subr.mxu0 0.0
    %283 = vmatpush1.msra.mxu0 0.0
    %284 = vmatprep.subr.mxu0 0.0
    %285 = vmatpush1.msra.mxu0 0.0
    %286 = vmatprep.subr.mxu0 0.0
    %287 = vmatpush1.msra.mxu0 0.0
    %288 = vmatprep.subr.mxu0 0.0
    %289 = vmatpush1.msra.mxu0 0.0
    %290 = vmatprep.subr.mxu0 0.0
    %291 = vmatpush1.msra.mxu0 0.0
    %292 = vmatprep.subr.mxu0 0.0
    %293 = vmatpush1.msra.mxu0 0.0
    %294 = vmatprep.subr.mxu0 0.0
    %295 = vmatpush1.msra.mxu0 0.0
    %296 = vmatprep.subr.mxu0 0.0
    %297 = vmatpush1.msra.mxu0 0.0
    %298 = vmatprep.subr.mxu0 0.0
    %299 = vmatpush1.msra.mxu0 0.0
    %300 = vmatprep.subr.mxu0 0.0
    %301 = vmatpush1.msra.mxu0 0.0
    %302 = vmatprep.subr.mxu0 0.0
    %303 = vmatpush1.msra.mxu0 0.0
    %304 = vmatprep.subr.mxu0 0.0
    %305 = vmatpush1.msra.mxu0 0.0
    %306 = vmatprep.subr.mxu0 0.0
    %307 = vmatpush1.msra.mxu0 0.0
    %308 = vmatprep.subr.mxu0 0.0
    %309 = vmatpush1.msra.mxu0 0.0
    %310 = vmatprep.subr.mxu0 0.0
    %311 = vmatpush1.msra.mxu0 0.0
    %312 = vmatprep.subr.mxu0 0.0
    %313 = vmatpush1.msra.mxu0 0.0
    %314 = vmatprep.subr.mxu0 0.0
    %315 = vmatpush1.msra.mxu0 0.0
    %316 = vmatprep.subr.mxu0 0.0
    %317 = vmatpush1.msra.mxu0 0.0
    %318 = vmatprep.subr.mxu0 0.0
    %319 = vmatpush1.msra.mxu0 0.0
    %320 = vmatprep.subr.mxu0 0.0
    %321 = vmatpush1.msra.mxu0 0.0
    %322 = vmatprep.subr.mxu0 0.0
    %323 = vmatpush1.msra.mxu0 0.0
    %324 = vmatprep.subr.mxu0 0.0
    %325 = vmatpush1.msra.mxu0 0.0
    %326 = vmatprep.subr.mxu0 0.0
    %327 = vmatpush1.msra.mxu0 0.0
    %328 = vmatprep.subr.mxu0 0.0
    %329 = vmatpush1.msra.mxu0 0.0
    %330 = vmatprep.subr.mxu0 0.0
    %331 = vmatpush1.msra.mxu0 0.0
    %332 = vmatprep.subr.mxu0 0.0
    %333 = vmatpush1.msra.mxu0 0.0
    %334 = vmatprep.mubr.f32.mxu0 0.0
    %v335 = vand.u32 %v260, 4294901760
    %v336 = vsub.f32 %v260, %v335
    %v337 = vand.u32 %v336, 4294901760
    %v338 = vsub.f32 %v336, %v337
    %v339 = vand.u32 %v338, 4294901760
    %340 = vmatmul.mubr.f32.gmra.mrb[0].mxu0 %v339
    %v341 = vpop.f32.mrb[0].mxu0
    %v342 = vadd.f32 0.0, %v341
    %v343 = vpop.f32.mrb[0].mxu0
    %v344 = vadd.f32 0.0, %v343
    %345 = vdwg.mxu0
    %v346 = vand.u32 %v194, 4294901760
    %v347 = vsub.f32 %v194, %v346
    %v348 = vand.u32 %v347, 4294901760
    %v349 = vsub.f32 %v347, %v348
    %v350 = vand.u32 %v349, 4294901760
    %351 = vmatprep.subr.mxu0 %v350
    %v352 = vand.u32 %v193, 4294901760
    %v353 = vsub.f32 %v193, %v352
    %v354 = vand.u32 %v353, 4294901760
    %v355 = vsub.f32 %v353, %v354
    %v356 = vand.u32 %v355, 4294901760
    %357 = vmatpush1.msra.mxu0 %v356
    %v358 = vand.u32 %v202, 4294901760
    %v359 = vsub.f32 %v202, %v358
    %v360 = vand.u32 %v359, 4294901760
    %v361 = vsub.f32 %v359, %v360
    %v362 = vand.u32 %v361, 4294901760
    %363 = vmatprep.subr.mxu0 %v362
    %v364 = vand.u32 %v201, 4294901760
    %v365 = vsub.f32 %v201, %v364
    %v366 = vand.u32 %v365, 4294901760
    %v367 = vsub.f32 %v365, %v366
    %v368 = vand.u32 %v367, 4294901760
    %369 = vmatpush1.msra.mxu0 %v368
    %v370 = vand.u32 %v210, 4294901760
    %v371 = vsub.f32 %v210, %v370
    %v372 = vand.u32 %v371, 4294901760
    %v373 = vsub.f32 %v371, %v372
    %v374 = vand.u32 %v373, 4294901760
    %375 = vmatprep.subr.mxu0 %v374
    %v376 = vand.u32 %v209, 4294901760
    %v377 = vsub.f32 %v209, %v376
    %v378 = vand.u32 %v377, 4294901760
    %v379 = vsub.f32 %v377, %v378
    %v380 = vand.u32 %v379, 4294901760
    %381 = vmatpush1.msra.mxu0 %v380
    %v382 = vand.u32 %v218, 4294901760
    %v383 = vsub.f32 %v218, %v382
    %v384 = vand.u32 %v383, 4294901760
    %v385 = vsub.f32 %v383, %v384
    %v386 = vand.u32 %v385, 4294901760
    %387 = vmatprep.subr.mxu0 %v386
    %v388 = vand.u32 %v217, 4294901760
    %v389 = vsub.f32 %v217, %v388
    %v390 = vand.u32 %v389, 4294901760
    %v391 = vsub.f32 %v389, %v390
    %v392 = vand.u32 %v391, 4294901760
    %393 = vmatpush1.msra.mxu0 %v392
    %394 = vmatprep.subr.mxu0 0.0
    %395 = vmatpush1.msra.mxu0 0.0
    %396 = vmatprep.subr.mxu0 0.0
    %397 = vmatpush1.msra.mxu0 0.0
    %398 = vmatprep.subr.mxu0 0.0
    %399 = vmatpush1.msra.mxu0 0.0
    %400 = vmatprep.subr.mxu0 0.0
    %401 = vmatpush1.msra.mxu0 0.0
    %402 = vmatprep.subr.mxu0 0.0
    %403 = vmatpush1.msra.mxu0 0.0
    %404 = vmatprep.subr.mxu0 0.0
    %405 = vmatpush1.msra.mxu0 0.0
    %406 = vmatprep.subr.mxu0 0.0
    %407 = vmatpush1.msra.mxu0 0.0
    %408 = vmatprep.subr.mxu0 0.0
    %409 = vmatpush1.msra.mxu0 0.0
    %410 = vmatprep.subr.mxu0 0.0
    %411 = vmatpush1.msra.mxu0 0.0
    %412 = vmatprep.subr.mxu0 0.0
    %413 = vmatpush1.msra.mxu0 0.0
    %414 = vmatprep.subr.mxu0 0.0
    %415 = vmatpush1.msra.mxu0 0.0
    %416 = vmatprep.subr.mxu0 0.0
    %417 = vmatpush1.msra.mxu0 0.0
    %418 = vmatprep.subr.mxu0 0.0
    %419 = vmatpush1.msra.mxu0 0.0
    %420 = vmatprep.subr.mxu0 0.0
    %421 = vmatpush1.msra.mxu0 0.0
    %422 = vmatprep.subr.mxu0 0.0
    %423 = vmatpush1.msra.mxu0 0.0
    %424 = vmatprep.subr.mxu0 0.0
    %425 = vmatpush1.msra.mxu0 0.0
    %426 = vmatprep.subr.mxu0 0.0
    %427 = vmatpush1.msra.mxu0 0.0
    %428 = vmatprep.subr.mxu0 0.0
    %429 = vmatpush1.msra.mxu0 0.0
    %430 = vmatprep.subr.mxu0 0.0
    %431 = vmatpush1.msra.mxu0 0.0
    %432 = vmatprep.subr.mxu0 0.0
    %433 = vmatpush1.msra.mxu0 0.0
    %434 = vmatprep.subr.mxu0 0.0
    %435 = vmatpush1.msra.mxu0 0.0
    %436 = vmatprep.subr.mxu0 0.0
    %437 = vmatpush1.msra.mxu0 0.0
    %438 = vmatprep.subr.mxu0 0.0
    %439 = vmatpush1.msra.mxu0 0.0
    %440 = vmatprep.subr.mxu0 0.0
    %441 = vmatpush1.msra.mxu0 0.0
    %442 = vmatprep.subr.mxu0 0.0
    %443 = vmatpush1.msra.mxu0 0.0
    %444 = vmatprep.subr.mxu0 0.0
    %445 = vmatpush1.msra.mxu0 0.0
    %446 = vmatprep.subr.mxu0 0.0
    %447 = vmatpush1.msra.mxu0 0.0
    %448 = vmatprep.subr.mxu0 0.0
    %449 = vmatpush1.msra.mxu0 0.0
    %450 = vmatprep.mubr.f32.mxu0 0.0
    %v451 = vand.u32 %v260, 4294901760
    %452 = vmatmul.mubr.f32.gmra.mrb[0].mxu0 %v451
    %v453 = vpop.f32.mrb[0].mxu0
    %v454 = vadd.f32 %v342, %v453
    %v455 = vpop.f32.mrb[0].mxu0
    %v456 = vadd.f32 %v344, %v455
    %457 = vdwg.mxu0
    %v458 = vand.u32 %v194, 4294901760
    %v459 = vsub.f32 %v194, %v458
    %460 = vmatprep.subr.mxu0 %v459
    %v461 = vand.u32 %v193, 4294901760
    %v462 = vsub.f32 %v193, %v461
    %463 = vmatpush1.msra.mxu0 %v462
    %v464 = vand.u32 %v202, 4294901760
    %v465 = vsub.f32 %v202, %v464
    %466 = vmatprep.subr.mxu0 %v465
    %v467 = vand.u32 %v201, 4294901760
    %v468 = vsub.f32 %v201, %v467
    %469 = vmatpush1.msra.mxu0 %v468
    %v470 = vand.u32 %v210, 4294901760
    %v471 = vsub.f32 %v210, %v470
    %472 = vmatprep.subr.mxu0 %v471
    %v473 = vand.u32 %v209, 4294901760
    %v474 = vsub.f32 %v209, %v473
    %475 = vmatpush1.msra.mxu0 %v474
    %v476 = vand.u32 %v218, 4294901760
    %v477 = vsub.f32 %v218, %v476
    %478 = vmatprep.subr.mxu0 %v477
    %v479 = vand.u32 %v217, 4294901760
    %v480 = vsub.f32 %v217, %v479
    %481 = vmatpush1.msra.mxu0 %v480
    %482 = vmatprep.subr.mxu0 0.0
    %483 = vmatpush1.msra.mxu0 0.0
    %484 = vmatprep.subr.mxu0 0.0
    %485 = vmatpush1.msra.mxu0 0.0
    %486 = vmatprep.subr.mxu0 0.0
    %487 = vmatpush1.msra.mxu0 0.0
    %488 = vmatprep.subr.mxu0 0.0
    %489 = vmatpush1.msra.mxu0 0.0
    %490 = vmatprep.subr.mxu0 0.0
    %491 = vmatpush1.msra.mxu0 0.0
    %492 = vmatprep.subr.mxu0 0.0
    %493 = vmatpush1.msra.mxu0 0.0
    %494 = vmatprep.subr.mxu0 0.0
    %495 = vmatpush1.msra.mxu0 0.0
    %496 = vmatprep.subr.mxu0 0.0
    %497 = vmatpush1.msra.mxu0 0.0
    %498 = vmatprep.subr.mxu0 0.0
    %499 = vmatpush1.msra.mxu0 0.0
    %500 = vmatprep.subr.mxu0 0.0
    %501 = vmatpush1.msra.mxu0 0.0
    %502 = vmatprep.subr.mxu0 0.0
    %503 = vmatpush1.msra.mxu0 0.0
    %504 = vmatprep.subr.mxu0 0.0
    %505 = vmatpush1.msra.mxu0 0.0
    %506 = vmatprep.subr.mxu0 0.0
    %507 = vmatpush1.msra.mxu0 0.0
    %508 = vmatprep.subr.mxu0 0.0
    %509 = vmatpush1.msra.mxu0 0.0
    %510 = vmatprep.subr.mxu0 0.0
    %511 = vmatpush1.msra.mxu0 0.0
    %512 = vmatprep.subr.mxu0 0.0
    %513 = vmatpush1.msra.mxu0 0.0
    %514 = vmatprep.subr.mxu0 0.0
    %515 = vmatpush1.msra.mxu0 0.0
    %516 = vmatprep.subr.mxu0 0.0
    %517 = vmatpush1.msra.mxu0 0.0
    %518 = vmatprep.subr.mxu0 0.0
    %519 = vmatpush1.msra.mxu0 0.0
    %520 = vmatprep.subr.mxu0 0.0
    %521 = vmatpush1.msra.mxu0 0.0
    %522 = vmatprep.subr.mxu0 0.0
    %523 = vmatpush1.msra.mxu0 0.0
    %524 = vmatprep.subr.mxu0 0.0
    %525 = vmatpush1.msra.mxu0 0.0
    %526 = vmatprep.subr.mxu0 0.0
    %527 = vmatpush1.msra.mxu0 0.0
    %528 = vmatprep.subr.mxu0 0.0
    %529 = vmatpush1.msra.mxu0 0.0
    %530 = vmatprep.subr.mxu0 0.0
    %531 = vmatpush1.msra.mxu0 0.0
    %532 = vmatprep.subr.mxu0 0.0
    %533 = vmatpush1.msra.mxu0 0.0
    %534 = vmatprep.subr.mxu0 0.0
    %535 = vmatpush1.msra.mxu0 0.0
    %536 = vmatprep.subr.mxu0 0.0
    %537 = vmatpush1.msra.mxu0 0.0
    %538 = vmatprep.mubr.f32.mxu0 0.0
    %v539 = vand.u32 %v260, 4294901760
    %v540 = vsub.f32 %v260, %v539
    %541 = vmatmul.mubr.f32.gmra.mrb[0].mxu0 %v540
    %v542 = vpop.f32.mrb[0].mxu0
    %v543 = vadd.f32 %v454, %v542
    %v544 = vpop.f32.mrb[0].mxu0
    %v545 = vadd.f32 %v456, %v544
    %546 = vdwg.mxu0
    %v547 = vand.u32 %v194, 4294901760
    %548 = vmatprep.subr.mxu0 %v547
    %v549 = vand.u32 %v193, 4294901760
    %550 = vmatpush1.msra.mxu0 %v549
    %v551 = vand.u32 %v202, 4294901760
    %552 = vmatprep.subr.mxu0 %v551
    %v553 = vand.u32 %v201, 4294901760
    %554 = vmatpush1.msra.mxu0 %v553
    %v555 = vand.u32 %v210, 4294901760
    %556 = vmatprep.subr.mxu0 %v555
    %v557 = vand.u32 %v209, 4294901760
    %558 = vmatpush1.msra.mxu0 %v557
    %v559 = vand.u32 %v218, 4294901760
    %560 = vmatprep.subr.mxu0 %v559
    %v561 = vand.u32 %v217, 4294901760
    %562 = vmatpush1.msra.mxu0 %v561
    %563 = vmatprep.subr.mxu0 0.0
    %564 = vmatpush1.msra.mxu0 0.0
    %565 = vmatprep.subr.mxu0 0.0
    %566 = vmatpush1.msra.mxu0 0.0
    %567 = vmatprep.subr.mxu0 0.0
    %568 = vmatpush1.msra.mxu0 0.0
    %569 = vmatprep.subr.mxu0 0.0
    %570 = vmatpush1.msra.mxu0 0.0
    %571 = vmatprep.subr.mxu0 0.0
    %572 = vmatpush1.msra.mxu0 0.0
    %573 = vmatprep.subr.mxu0 0.0
    %574 = vmatpush1.msra.mxu0 0.0
    %575 = vmatprep.subr.mxu0 0.0
    %576 = vmatpush1.msra.mxu0 0.0
    %577 = vmatprep.subr.mxu0 0.0
    %578 = vmatpush1.msra.mxu0 0.0
    %579 = vmatprep.subr.mxu0 0.0
    %580 = vmatpush1.msra.mxu0 0.0
    %581 = vmatprep.subr.mxu0 0.0
    %582 = vmatpush1.msra.mxu0 0.0
    %583 = vmatprep.subr.mxu0 0.0
    %584 = vmatpush1.msra.mxu0 0.0
    %585 = vmatprep.subr.mxu0 0.0
    %586 = vmatpush1.msra.mxu0 0.0
    %587 = vmatprep.subr.mxu0 0.0
    %588 = vmatpush1.msra.mxu0 0.0
    %589 = vmatprep.subr.mxu0 0.0
    %590 = vmatpush1.msra.mxu0 0.0
    %591 = vmatprep.subr.mxu0 0.0
    %592 = vmatpush1.msra.mxu0 0.0
    %593 = vmatprep.subr.mxu0 0.0
    %594 = vmatpush1.msra.mxu0 0.0
    %595 = vmatprep.subr.mxu0 0.0
    %596 = vmatpush1.msra.mxu0 0.0
    %597 = vmatprep.subr.mxu0 0.0
    %598 = vmatpush1.msra.mxu0 0.0
    %599 = vmatprep.subr.mxu0 0.0
    %600 = vmatpush1.msra.mxu0 0.0
    %601 = vmatprep.subr.mxu0 0.0
    %602 = vmatpush1.msra.mxu0 0.0
    %603 = vmatprep.subr.mxu0 0.0
    %604 = vmatpush1.msra.mxu0 0.0
    %605 = vmatprep.subr.mxu0 0.0
    %606 = vmatpush1.msra.mxu0 0.0
    %607 = vmatprep.subr.mxu0 0.0
    %608 = vmatpush1.msra.mxu0 0.0
    %609 = vmatprep.subr.mxu0 0.0
    %610 = vmatpush1.msra.mxu0 0.0
    %611 = vmatprep.subr.mxu0 0.0
    %612 = vmatpush1.msra.mxu0 0.0
    %613 = vmatprep.subr.mxu0 0.0
    %614 = vmatpush1.msra.mxu0 0.0
    %615 = vmatprep.subr.mxu0 0.0
    %616 = vmatpush1.msra.mxu0 0.0
    %617 = vmatprep.subr.mxu0 0.0
    %618 = vmatpush1.msra.mxu0 0.0
    %619 = vmatprep.mubr.f32.mxu0 0.0
    %v620 = vand.u32 %v260, 4294901760
    %v621 = vsub.f32 %v260, %v620
    %v622 = vand.u32 %v621, 4294901760
    %623 = vmatmul.mubr.f32.gmra.mrb[0].mxu0 %v622
    %v624 = vpop.f32.mrb[0].mxu0
    %v625 = vadd.f32 %v543, %v624
    %v626 = vpop.f32.mrb[0].mxu0
    %v627 = vadd.f32 %v545, %v626
    %628 = vdwg.mxu0
    %v629 = vand.u32 %v194, 4294901760
    %v630 = vsub.f32 %v194, %v629
    %v631 = vand.u32 %v630, 4294901760
    %632 = vmatprep.subr.mxu0 %v631
    %v633 = vand.u32 %v193, 4294901760
    %v634 = vsub.f32 %v193, %v633
    %v635 = vand.u32 %v634, 4294901760
    %636 = vmatpush1.msra.mxu0 %v635
    %v637 = vand.u32 %v202, 4294901760
    %v638 = vsub.f32 %v202, %v637
    %v639 = vand.u32 %v638, 4294901760
    %640 = vmatprep.subr.mxu0 %v639
    %v641 = vand.u32 %v201, 4294901760
    %v642 = vsub.f32 %v201, %v641
    %v643 = vand.u32 %v642, 4294901760
    %644 = vmatpush1.msra.mxu0 %v643
    %v645 = vand.u32 %v210, 4294901760
    %v646 = vsub.f32 %v210, %v645
    %v647 = vand.u32 %v646, 4294901760
    %648 = vmatprep.subr.mxu0 %v647
    %v649 = vand.u32 %v209, 4294901760
    %v650 = vsub.f32 %v209, %v649
    %v651 = vand.u32 %v650, 4294901760
    %652 = vmatpush1.msra.mxu0 %v651
    %v653 = vand.u32 %v218, 4294901760
    %v654 = vsub.f32 %v218, %v653
    %v655 = vand.u32 %v654, 4294901760
    %656 = vmatprep.subr.mxu0 %v655
    %v657 = vand.u32 %v217, 4294901760
    %v658 = vsub.f32 %v217, %v657
    %v659 = vand.u32 %v658, 4294901760
    %660 = vmatpush1.msra.mxu0 %v659
    %661 = vmatprep.subr.mxu0 0.0
    %662 = vmatpush1.msra.mxu0 0.0
    %663 = vmatprep.subr.mxu0 0.0
    %664 = vmatpush1.msra.mxu0 0.0
    %665 = vmatprep.subr.mxu0 0.0
    %666 = vmatpush1.msra.mxu0 0.0
    %667 = vmatprep.subr.mxu0 0.0
    %668 = vmatpush1.msra.mxu0 0.0
    %669 = vmatprep.subr.mxu0 0.0
    %670 = vmatpush1.msra.mxu0 0.0
    %671 = vmatprep.subr.mxu0 0.0
    %672 = vmatpush1.msra.mxu0 0.0
    %673 = vmatprep.subr.mxu0 0.0
    %674 = vmatpush1.msra.mxu0 0.0
    %675 = vmatprep.subr.mxu0 0.0
    %676 = vmatpush1.msra.mxu0 0.0
    %677 = vmatprep.subr.mxu0 0.0
    %678 = vmatpush1.msra.mxu0 0.0
    %679 = vmatprep.subr.mxu0 0.0
    %680 = vmatpush1.msra.mxu0 0.0
    %681 = vmatprep.subr.mxu0 0.0
    %682 = vmatpush1.msra.mxu0 0.0
    %683 = vmatprep.subr.mxu0 0.0
    %684 = vmatpush1.msra.mxu0 0.0
    %685 = vmatprep.subr.mxu0 0.0
    %686 = vmatpush1.msra.mxu0 0.0
    %687 = vmatprep.subr.mxu0 0.0
    %688 = vmatpush1.msra.mxu0 0.0
    %689 = vmatprep.subr.mxu0 0.0
    %690 = vmatpush1.msra.mxu0 0.0
    %691 = vmatprep.subr.mxu0 0.0
    %692 = vmatpush1.msra.mxu0 0.0
    %693 = vmatprep.subr.mxu0 0.0
    %694 = vmatpush1.msra.mxu0 0.0
    %695 = vmatprep.subr.mxu0 0.0
    %696 = vmatpush1.msra.mxu0 0.0
    %697 = vmatprep.subr.mxu0 0.0
    %698 = vmatpush1.msra.mxu0 0.0
    %699 = vmatprep.subr.mxu0 0.0
    %700 = vmatpush1.msra.mxu0 0.0
    %701 = vmatprep.subr.mxu0 0.0
    %702 = vmatpush1.msra.mxu0 0.0
    %703 = vmatprep.subr.mxu0 0.0
    %704 = vmatpush1.msra.mxu0 0.0
    %705 = vmatprep.subr.mxu0 0.0
    %706 = vmatpush1.msra.mxu0 0.0
    %707 = vmatprep.subr.mxu0 0.0
    %708 = vmatpush1.msra.mxu0 0.0
    %709 = vmatprep.subr.mxu0 0.0
    %710 = vmatpush1.msra.mxu0 0.0
    %711 = vmatprep.subr.mxu0 0.0
    %712 = vmatpush1.msra.mxu0 0.0
    %713 = vmatprep.subr.mxu0 0.0
    %714 = vmatpush1.msra.mxu0 0.0
    %715 = vmatprep.subr.mxu0 0.0
    %716 = vmatpush1.msra.mxu0 0.0
    %717 = vmatprep.mubr.f32.mxu0 0.0
    %v718 = vand.u32 %v260, 4294901760
    %719 = vmatmul.mubr.f32.gmra.mrb[0].mxu0 %v718
    %v720 = vpop.f32.mrb[0].mxu0
    %v721 = vadd.f32 %v625, %v720
    %v722 = vpop.f32.mrb[0].mxu0
    %v723 = vadd.f32 %v627, %v722
    %724 = vdwg.mxu0
    %v725 = vand.u32 %v194, 4294901760
    %726 = vmatprep.subr.mxu0 %v725
    %v727 = vand.u32 %v193, 4294901760
    %728 = vmatpush1.msra.mxu0 %v727
    %v729 = vand.u32 %v202, 4294901760
    %730 = vmatprep.subr.mxu0 %v729
    %v731 = vand.u32 %v201, 4294901760
    %732 = vmatpush1.msra.mxu0 %v731
    %v733 = vand.u32 %v210, 4294901760
    %734 = vmatprep.subr.mxu0 %v733
    %v735 = vand.u32 %v209, 4294901760
    %736 = vmatpush1.msra.mxu0 %v735
    %v737 = vand.u32 %v218, 4294901760
    %738 = vmatprep.subr.mxu0 %v737
    %v739 = vand.u32 %v217, 4294901760
    %740 = vmatpush1.msra.mxu0 %v739
    %741 = vmatprep.subr.mxu0 0.0
    %742 = vmatpush1.msra.mxu0 0.0
    %743 = vmatprep.subr.mxu0 0.0
    %744 = vmatpush1.msra.mxu0 0.0
    %745 = vmatprep.subr.mxu0 0.0
    %746 = vmatpush1.msra.mxu0 0.0
    %747 = vmatprep.subr.mxu0 0.0
    %748 = vmatpush1.msra.mxu0 0.0
    %749 = vmatprep.subr.mxu0 0.0
    %750 = vmatpush1.msra.mxu0 0.0
    %751 = vmatprep.subr.mxu0 0.0
    %752 = vmatpush1.msra.mxu0 0.0
    %753 = vmatprep.subr.mxu0 0.0
    %754 = vmatpush1.msra.mxu0 0.0
    %755 = vmatprep.subr.mxu0 0.0
    %756 = vmatpush1.msra.mxu0 0.0
    %757 = vmatprep.subr.mxu0 0.0
    %758 = vmatpush1.msra.mxu0 0.0
    %759 = vmatprep.subr.mxu0 0.0
    %760 = vmatpush1.msra.mxu0 0.0
    %761 = vmatprep.subr.mxu0 0.0
    %762 = vmatpush1.msra.mxu0 0.0
    %763 = vmatprep.subr.mxu0 0.0
    %764 = vmatpush1.msra.mxu0 0.0
    %765 = vmatprep.subr.mxu0 0.0
    %766 = vmatpush1.msra.mxu0 0.0
    %767 = vmatprep.subr.mxu0 0.0
    %768 = vmatpush1.msra.mxu0 0.0
    %769 = vmatprep.subr.mxu0 0.0
    %770 = vmatpush1.msra.mxu0 0.0
    %771 = vmatprep.subr.mxu0 0.0
    %772 = vmatpush1.msra.mxu0 0.0
    %773 = vmatprep.subr.mxu0 0.0
    %774 = vmatpush1.msra.mxu0 0.0
    %775 = vmatprep.subr.mxu0 0.0
    %776 = vmatpush1.msra.mxu0 0.0
    %777 = vmatprep.subr.mxu0 0.0
    %778 = vmatpush1.msra.mxu0 0.0
    %779 = vmatprep.subr.mxu0 0.0
    %780 = vmatpush1.msra.mxu0 0.0
    %781 = vmatprep.subr.mxu0 0.0
    %782 = vmatpush1.msra.mxu0 0.0
    %783 = vmatprep.subr.mxu0 0.0
    %784 = vmatpush1.msra.mxu0 0.0
    %785 = vmatprep.subr.mxu0 0.0
    %786 = vmatpush1.msra.mxu0 0.0
    %787 = vmatprep.subr.mxu0 0.0
    %788 = vmatpush1.msra.mxu0 0.0
    %789 = vmatprep.subr.mxu0 0.0
    %790 = vmatpush1.msra.mxu0 0.0
    %791 = vmatprep.subr.mxu0 0.0
    %792 = vmatpush1.msra.mxu0 0.0
    %793 = vmatprep.subr.mxu0 0.0
    %794 = vmatpush1.msra.mxu0 0.0
    %795 = vmatprep.subr.mxu0 0.0
    %796 = vmatpush1.msra.mxu0 0.0
    %797 = vmatprep.mubr.f32.mxu0 0.0
    %v798 = vand.u32 %v260, 4294901760
    %799 = vmatmul.mubr.f32.gmra.mrb[0].mxu0 %v798
    %v800 = vpop.f32.mrb[0].mxu0
    %v801 = vadd.f32 %v721, %v800
    %v802 = vpop.f32.mrb[0].mxu0
    %v803 = vadd.f32 %v723, %v802
    %804 = vdwg.mxu0
    %v805 = vand.u32 %v196, 4294901760
    %806 = vmatprep.subr.mxu0 %v805
    %v807 = vand.u32 %v195, 4294901760
    %808 = vmatpush1.msra.mxu0 %v807
    %v809 = vand.u32 %v204, 4294901760
    %810 = vmatprep.subr.mxu0 %v809
    %v811 = vand.u32 %v203, 4294901760
    %812 = vmatpush1.msra.mxu0 %v811
    %v813 = vand.u32 %v212, 4294901760
    %814 = vmatprep.subr.mxu0 %v813
    %v815 = vand.u32 %v211, 4294901760
    %816 = vmatpush1.msra.mxu0 %v815
    %v817 = vand.u32 %v220, 4294901760
    %818 = vmatprep.subr.mxu0 %v817
    %v819 = vand.u32 %v219, 4294901760
    %820 = vmatpush1.msra.mxu0 %v819
    %821 = vmatprep.subr.mxu0 0.0
    %822 = vmatpush1.msra.mxu0 0.0
    %823 = vmatprep.subr.mxu0 0.0
    %824 = vmatpush1.msra.mxu0 0.0
    %825 = vmatprep.subr.mxu0 0.0
    %826 = vmatpush1.msra.mxu0 0.0
    %827 = vmatprep.subr.mxu0 0.0
    %828 = vmatpush1.msra.mxu0 0.0
    %829 = vmatprep.subr.mxu0 0.0
    %830 = vmatpush1.msra.mxu0 0.0
    %831 = vmatprep.subr.mxu0 0.0
    %832 = vmatpush1.msra.mxu0 0.0
    %833 = vmatprep.subr.mxu0 0.0
    %834 = vmatpush1.msra.mxu0 0.0
    %835 = vmatprep.subr.mxu0 0.0
    %836 = vmatpush1.msra.mxu0 0.0
    %837 = vmatprep.subr.mxu0 0.0
    %838 = vmatpush1.msra.mxu0 0.0
    %839 = vmatprep.subr.mxu0 0.0
    %840 = vmatpush1.msra.mxu0 0.0
    %841 = vmatprep.subr.mxu0 0.0
    %842 = vmatpush1.msra.mxu0 0.0
    %843 = vmatprep.subr.mxu0 0.0
    %844 = vmatpush1.msra.mxu0 0.0
    %845 = vmatprep.subr.mxu0 0.0
    %846 = vmatpush1.msra.mxu0 0.0
    %847 = vmatprep.subr.mxu0 0.0
    %848 = vmatpush1.msra.mxu0 0.0
    %849 = vmatprep.subr.mxu0 0.0
    %850 = vmatpush1.msra.mxu0 0.0
    %851 = vmatprep.subr.mxu0 0.0
    %852 = vmatpush1.msra.mxu0 0.0
    %853 = vmatprep.subr.mxu0 0.0
    %854 = vmatpush1.msra.mxu0 0.0
    %855 = vmatprep.subr.mxu0 0.0
    %856 = vmatpush1.msra.mxu0 0.0
    %857 = vmatprep.subr.mxu0 0.0
    %858 = vmatpush1.msra.mxu0 0.0
    %859 = vmatprep.subr.mxu0 0.0
    %860 = vmatpush1.msra.mxu0 0.0
    %861 = vmatprep.subr.mxu0 0.0
    %862 = vmatpush1.msra.mxu0 0.0
    %863 = vmatprep.subr.mxu0 0.0
    %864 = vmatpush1.msra.mxu0 0.0
    %865 = vmatprep.subr.mxu0 0.0
    %866 = vmatpush1.msra.mxu0 0.0
    %867 = vmatprep.subr.mxu0 0.0
    %868 = vmatpush1.msra.mxu0 0.0
    %869 = vmatprep.subr.mxu0 0.0
    %870 = vmatpush1.msra.mxu0 0.0
    %871 = vmatprep.subr.mxu0 0.0
    %872 = vmatpush1.msra.mxu0 0.0
    %873 = vmatprep.subr.mxu0 0.0
    %874 = vmatpush1.msra.mxu0 0.0
    %875 = vmatprep.subr.mxu0 0.0
    %876 = vmatpush1.msra.mxu0 0.0
    %877 = vmatprep.mubr.f32.mxu0 0.0
    %v878 = vand.u32 %v260, 4294901760
    %v879 = vsub.f32 %v260, %v878
    %v880 = vand.u32 %v879, 4294901760
    %v881 = vsub.f32 %v879, %v880
    %v882 = vand.u32 %v881, 4294901760
    %883 = vmatmul.mubr.f32.gmra.mrb[0].mxu0 %v882
    %v884 = vpop.f32.mrb[0].mxu0
    %v885 = vadd.f32 0.0, %v884
    %v886 = vpop.f32.mrb[0].mxu0
    %v887 = vadd.f32 0.0, %v886
    %888 = vdwg.mxu0
    %v889 = vand.u32 %v196, 4294901760
    %v890 = vsub.f32 %v196, %v889
    %v891 = vand.u32 %v890, 4294901760
    %v892 = vsub.f32 %v890, %v891
    %v893 = vand.u32 %v892, 4294901760
    %894 = vmatprep.subr.mxu0 %v893
    %v895 = vand.u32 %v195, 4294901760
    %v896 = vsub.f32 %v195, %v895
    %v897 = vand.u32 %v896, 4294901760
    %v898 = vsub.f32 %v896, %v897
    %v899 = vand.u32 %v898, 4294901760
    %900 = vmatpush1.msra.mxu0 %v899
    %v901 = vand.u32 %v204, 4294901760
    %v902 = vsub.f32 %v204, %v901
    %v903 = vand.u32 %v902, 4294901760
    %v904 = vsub.f32 %v902, %v903
    %v905 = vand.u32 %v904, 4294901760
    %906 = vmatprep.subr.mxu0 %v905
    %v907 = vand.u32 %v203, 4294901760
    %v908 = vsub.f32 %v203, %v907
    %v909 = vand.u32 %v908, 4294901760
    %v910 = vsub.f32 %v908, %v909
    %v911 = vand.u32 %v910, 4294901760
    %912 = vmatpush1.msra.mxu0 %v911
    %v913 = vand.u32 %v212, 4294901760
    %v914 = vsub.f32 %v212, %v913
    %v915 = vand.u32 %v914, 4294901760
    %v916 = vsub.f32 %v914, %v915
    %v917 = vand.u32 %v916, 4294901760
    %918 = vmatprep.subr.mxu0 %v917
    %v919 = vand.u32 %v211, 4294901760
    %v920 = vsub.f32 %v211, %v919
    %v921 = vand.u32 %v920, 4294901760
    %v922 = vsub.f32 %v920, %v921
    %v923 = vand.u32 %v922, 4294901760
    %924 = vmatpush1.msra.mxu0 %v923
    %v925 = vand.u32 %v220, 4294901760
    %v926 = vsub.f32 %v220, %v925
    %v927 = vand.u32 %v926, 4294901760
    %v928 = vsub.f32 %v926, %v927
    %v929 = vand.u32 %v928, 4294901760
    %930 = vmatprep.subr.mxu0 %v929
    %v931 = vand.u32 %v219, 4294901760
    %v932 = vsub.f32 %v219, %v931
    %v933 = vand.u32 %v932, 4294901760
    %v934 = vsub.f32 %v932, %v933
    %v935 = vand.u32 %v934, 4294901760
    %936 = vmatpush1.msra.mxu0 %v935
    %937 = vmatprep.subr.mxu0 0.0
    %938 = vmatpush1.msra.mxu0 0.0
    %939 = vmatprep.subr.mxu0 0.0
    %940 = vmatpush1.msra.mxu0 0.0
    %941 = vmatprep.subr.mxu0 0.0
    %942 = vmatpush1.msra.mxu0 0.0
    %943 = vmatprep.subr.mxu0 0.0
    %944 = vmatpush1.msra.mxu0 0.0
    %945 = vmatprep.subr.mxu0 0.0
    %946 = vmatpush1.msra.mxu0 0.0
    %947 = vmatprep.subr.mxu0 0.0
    %948 = vmatpush1.msra.mxu0 0.0
    %949 = vmatprep.subr.mxu0 0.0
    %950 = vmatpush1.msra.mxu0 0.0
    %951 = vmatprep.subr.mxu0 0.0
    %952 = vmatpush1.msra.mxu0 0.0
    %953 = vmatprep.subr.mxu0 0.0
    %954 = vmatpush1.msra.mxu0 0.0
    %955 = vmatprep.subr.mxu0 0.0
    %956 = vmatpush1.msra.mxu0 0.0
    %957 = vmatprep.subr.mxu0 0.0
    %958 = vmatpush1.msra.mxu0 0.0
    %959 = vmatprep.subr.mxu0 0.0
    %960 = vmatpush1.msra.mxu0 0.0
    %961 = vmatprep.subr.mxu0 0.0
    %962 = vmatpush1.msra.mxu0 0.0
    %963 = vmatprep.subr.mxu0 0.0
    %964 = vmatpush1.msra.mxu0 0.0
    %965 = vmatprep.subr.mxu0 0.0
    %966 = vmatpush1.msra.mxu0 0.0
    %967 = vmatprep.subr.mxu0 0.0
    %968 = vmatpush1.msra.mxu0 0.0
    %969 = vmatprep.subr.mxu0 0.0
    %970 = vmatpush1.msra.mxu0 0.0
    %971 = vmatprep.subr.mxu0 0.0
    %972 = vmatpush1.msra.mxu0 0.0
    %973 = vmatprep.subr.mxu0 0.0
    %974 = vmatpush1.msra.mxu0 0.0
    %975 = vmatprep.subr.mxu0 0.0
    %976 = vmatpush1.msra.mxu0 0.0
    %977 = vmatprep.subr.mxu0 0.0
    %978 = vmatpush1.msra.mxu0 0.0
    %979 = vmatprep.subr.mxu0 0.0
    %980 = vmatpush1.msra.mxu0 0.0
    %981 = vmatprep.subr.mxu0 0.0
    %982 = vmatpush1.msra.mxu0 0.0
    %983 = vmatprep.subr.mxu0 0.0
    %984 = vmatpush1.msra.mxu0 0.0
    %985 = vmatprep.subr.mxu0 0.0
    %986 = vmatpush1.msra.mxu0 0.0
    %987 = vmatprep.subr.mxu0 0.0
    %988 = vmatpush1.msra.mxu0 0.0
    %989 = vmatprep.subr.mxu0 0.0
    %990 = vmatpush1.msra.mxu0 0.0
    %991 = vmatprep.subr.mxu0 0.0
    %992 = vmatpush1.msra.mxu0 0.0
    %993 = vmatprep.mubr.f32.mxu0 0.0
    %v994 = vand.u32 %v260, 4294901760
    %995 = vmatmul.mubr.f32.gmra.mrb[0].mxu0 %v994
    %v996 = vpop.f32.mrb[0].mxu0
    %v997 = vadd.f32 %v885, %v996
    %v998 = vpop.f32.mrb[0].mxu0
    %v999 = vadd.f32 %v887, %v998
    %1000 = vdwg.mxu0
    %v1001 = vand.u32 %v196, 4294901760
    %v1002 = vsub.f32 %v196, %v1001
    %1003 = vmatprep.subr.mxu0 %v1002
    %v1004 = vand.u32 %v195, 4294901760
    %v1005 = vsub.f32 %v195, %v1004
    %1006 = vmatpush1.msra.mxu0 %v1005
    %v1007 = vand.u32 %v204, 4294901760
    %v1008 = vsub.f32 %v204, %v1007
    %1009 = vmatprep.subr.mxu0 %v1008
    %v1010 = vand.u32 %v203, 4294901760
    %v1011 = vsub.f32 %v203, %v1010
    %1012 = vmatpush1.msra.mxu0 %v1011
    %v1013 = vand.u32 %v212, 4294901760
    %v1014 = vsub.f32 %v212, %v1013
    %1015 = vmatprep.subr.mxu0 %v1014
    %v1016 = vand.u32 %v211, 4294901760
    %v1017 = vsub.f32 %v211, %v1016
    %1018 = vmatpush1.msra.mxu0 %v1017
    %v1019 = vand.u32 %v220, 4294901760
    %v1020 = vsub.f32 %v220, %v1019
    %1021 = vmatprep.subr.mxu0 %v1020
    %v1022 = vand.u32 %v219, 4294901760
    %v1023 = vsub.f32 %v219, %v1022
    %1024 = vmatpush1.msra.mxu0 %v1023
    %1025 = vmatprep.subr.mxu0 0.0
    %1026 = vmatpush1.msra.mxu0 0.0
    %1027 = vmatprep.subr.mxu0 0.0
    %1028 = vmatpush1.msra.mxu0 0.0
    %1029 = vmatprep.subr.mxu0 0.0
    %1030 = vmatpush1.msra.mxu0 0.0
    %1031 = vmatprep.subr.mxu0 0.0
    %1032 = vmatpush1.msra.mxu0 0.0
    %1033 = vmatprep.subr.mxu0 0.0
    %1034 = vmatpush1.msra.mxu0 0.0
    %1035 = vmatprep.subr.mxu0 0.0
    %1036 = vmatpush1.msra.mxu0 0.0
    %1037 = vmatprep.subr.mxu0 0.0
    %1038 = vmatpush1.msra.mxu0 0.0
    %1039 = vmatprep.subr.mxu0 0.0
    %1040 = vmatpush1.msra.mxu0 0.0
    %1041 = vmatprep.subr.mxu0 0.0
    %1042 = vmatpush1.msra.mxu0 0.0
    %1043 = vmatprep.subr.mxu0 0.0
    %1044 = vmatpush1.msra.mxu0 0.0
    %1045 = vmatprep.subr.mxu0 0.0
    %1046 = vmatpush1.msra.mxu0 0.0
    %1047 = vmatprep.subr.mxu0 0.0
    %1048 = vmatpush1.msra.mxu0 0.0
    %1049 = vmatprep.subr.mxu0 0.0
    %1050 = vmatpush1.msra.mxu0 0.0
    %1051 = vmatprep.subr.mxu0 0.0
    %1052 = vmatpush1.msra.mxu0 0.0
    %1053 = vmatprep.subr.mxu0 0.0
    %1054 = vmatpush1.msra.mxu0 0.0
    %1055 = vmatprep.subr.mxu0 0.0
    %1056 = vmatpush1.msra.mxu0 0.0
    %1057 = vmatprep.subr.mxu0 0.0
    %1058 = vmatpush1.msra.mxu0 0.0
    %1059 = vmatprep.subr.mxu0 0.0
    %1060 = vmatpush1.msra.mxu0 0.0
    %1061 = vmatprep.subr.mxu0 0.0
    %1062 = vmatpush1.msra.mxu0 0.0
    %1063 = vmatprep.subr.mxu0 0.0
    %1064 = vmatpush1.msra.mxu0 0.0
    %1065 = vmatprep.subr.mxu0 0.0
    %1066 = vmatpush1.msra.mxu0 0.0
    %1067 = vmatprep.subr.mxu0 0.0
    %1068 = vmatpush1.msra.mxu0 0.0
    %1069 = vmatprep.subr.mxu0 0.0
    %1070 = vmatpush1.msra.mxu0 0.0
    %1071 = vmatprep.subr.mxu0 0.0
    %1072 = vmatpush1.msra.mxu0 0.0
    %1073 = vmatprep.subr.mxu0 0.0
    %1074 = vmatpush1.msra.mxu0 0.0
    %1075 = vmatprep.subr.mxu0 0.0
    %1076 = vmatpush1.msra.mxu0 0.0
    %1077 = vmatprep.subr.mxu0 0.0
    %1078 = vmatpush1.msra.mxu0 0.0
    %1079 = vmatprep.subr.mxu0 0.0
    %1080 = vmatpush1.msra.mxu0 0.0
    %1081 = vmatprep.mubr.f32.mxu0 0.0
    %v1082 = vand.u32 %v260, 4294901760
    %v1083 = vsub.f32 %v260, %v1082
    %1084 = vmatmul.mubr.f32.gmra.mrb[0].mxu0 %v1083
    %v1085 = vpop.f32.mrb[0].mxu0
    %v1086 = vadd.f32 %v997, %v1085
    %v1087 = vpop.f32.mrb[0].mxu0
    %v1088 = vadd.f32 %v999, %v1087
    %1089 = vdwg.mxu0
    %v1090 = vand.u32 %v196, 4294901760
    %1091 = vmatprep.subr.mxu0 %v1090
    %v1092 = vand.u32 %v195, 4294901760
    %1093 = vmatpush1.msra.mxu0 %v1092
    %v1094 = vand.u32 %v204, 4294901760
    %1095 = vmatprep.subr.mxu0 %v1094
    %v1096 = vand.u32 %v203, 4294901760
    %1097 = vmatpush1.msra.mxu0 %v1096
    %v1098 = vand.u32 %v212, 4294901760
    %1099 = vmatprep.subr.mxu0 %v1098
    %v1100 = vand.u32 %v211, 4294901760
    %1101 = vmatpush1.msra.mxu0 %v1100
    %v1102 = vand.u32 %v220, 4294901760
    %1103 = vmatprep.subr.mxu0 %v1102
    %v1104 = vand.u32 %v219, 4294901760
    %1105 = vmatpush1.msra.mxu0 %v1104
    %1106 = vmatprep.subr.mxu0 0.0
    %1107 = vmatpush1.msra.mxu0 0.0
    %1108 = vmatprep.subr.mxu0 0.0
    %1109 = vmatpush1.msra.mxu0 0.0
    %1110 = vmatprep.subr.mxu0 0.0
    %1111 = vmatpush1.msra.mxu0 0.0
    %1112 = vmatprep.subr.mxu0 0.0
    %1113 = vmatpush1.msra.mxu0 0.0
    %1114 = vmatprep.subr.mxu0 0.0
    %1115 = vmatpush1.msra.mxu0 0.0
    %1116 = vmatprep.subr.mxu0 0.0
    %1117 = vmatpush1.msra.mxu0 0.0
    %1118 = vmatprep.subr.mxu0 0.0
    %1119 = vmatpush1.msra.mxu0 0.0
    %1120 = vmatprep.subr.mxu0 0.0
    %1121 = vmatpush1.msra.mxu0 0.0
    %1122 = vmatprep.subr.mxu0 0.0
    %1123 = vmatpush1.msra.mxu0 0.0
    %1124 = vmatprep.subr.mxu0 0.0
    %1125 = vmatpush1.msra.mxu0 0.0
    %1126 = vmatprep.subr.mxu0 0.0
    %1127 = vmatpush1.msra.mxu0 0.0
    %1128 = vmatprep.subr.mxu0 0.0
    %1129 = vmatpush1.msra.mxu0 0.0
    %1130 = vmatprep.subr.mxu0 0.0
    %1131 = vmatpush1.msra.mxu0 0.0
    %1132 = vmatprep.subr.mxu0 0.0
    %1133 = vmatpush1.msra.mxu0 0.0
    %1134 = vmatprep.subr.mxu0 0.0
    %1135 = vmatpush1.msra.mxu0 0.0
    %1136 = vmatprep.subr.mxu0 0.0
    %1137 = vmatpush1.msra.mxu0 0.0
    %1138 = vmatprep.subr.mxu0 0.0
    %1139 = vmatpush1.msra.mxu0 0.0
    %1140 = vmatprep.subr.mxu0 0.0
    %1141 = vmatpush1.msra.mxu0 0.0
    %1142 = vmatprep.subr.mxu0 0.0
    %1143 = vmatpush1.msra.mxu0 0.0
    %1144 = vmatprep.subr.mxu0 0.0
    %1145 = vmatpush1.msra.mxu0 0.0
    %1146 = vmatprep.subr.mxu0 0.0
    %1147 = vmatpush1.msra.mxu0 0.0
    %1148 = vmatprep.subr.mxu0 0.0
    %1149 = vmatpush1.msra.mxu0 0.0
    %1150 = vmatprep.subr.mxu0 0.0
    %1151 = vmatpush1.msra.mxu0 0.0
    %1152 = vmatprep.subr.mxu0 0.0
    %1153 = vmatpush1.msra.mxu0 0.0
    %1154 = vmatprep.subr.mxu0 0.0
    %1155 = vmatpush1.msra.mxu0 0.0
    %1156 = vmatprep.subr.mxu0 0.0
    %1157 = vmatpush1.msra.mxu0 0.0
    %1158 = vmatprep.subr.mxu0 0.0
    %1159 = vmatpush1.msra.mxu0 0.0
    %1160 = vmatprep.subr.mxu0 0.0
    %1161 = vmatpush1.msra.mxu0 0.0
    %1162 = vmatprep.mubr.f32.mxu0 0.0
    %v1163 = vand.u32 %v260, 4294901760
    %v1164 = vsub.f32 %v260, %v1163
    %v1165 = vand.u32 %v1164, 4294901760
    %1166 = vmatmul.mubr.f32.gmra.mrb[0].mxu0 %v1165
    %v1167 = vpop.f32.mrb[0].mxu0
    %v1168 = vadd.f32 %v1086, %v1167
    %v1169 = vpop.f32.mrb[0].mxu0
    %v1170 = vadd.f32 %v1088, %v1169
    %1171 = vdwg.mxu0
    %v1172 = vand.u32 %v196, 4294901760
    %v1173 = vsub.f32 %v196, %v1172
    %v1174 = vand.u32 %v1173, 4294901760
    %1175 = vmatprep.subr.mxu0 %v1174
    %v1176 = vand.u32 %v195, 4294901760
    %v1177 = vsub.f32 %v195, %v1176
    %v1178 = vand.u32 %v1177, 4294901760
    %1179 = vmatpush1.msra.mxu0 %v1178
    %v1180 = vand.u32 %v204, 4294901760
    %v1181 = vsub.f32 %v204, %v1180
    %v1182 = vand.u32 %v1181, 4294901760
    %1183 = vmatprep.subr.mxu0 %v1182
    %v1184 = vand.u32 %v203, 4294901760
    %v1185 = vsub.f32 %v203, %v1184
    %v1186 = vand.u32 %v1185, 4294901760
    %1187 = vmatpush1.msra.mxu0 %v1186
    %v1188 = vand.u32 %v212, 4294901760
    %v1189 = vsub.f32 %v212, %v1188
    %v1190 = vand.u32 %v1189, 4294901760
    %1191 = vmatprep.subr.mxu0 %v1190
    %v1192 = vand.u32 %v211, 4294901760
    %v1193 = vsub.f32 %v211, %v1192
    %v1194 = vand.u32 %v1193, 4294901760
    %1195 = vmatpush1.msra.mxu0 %v1194
    %v1196 = vand.u32 %v220, 4294901760
    %v1197 = vsub.f32 %v220, %v1196
    %v1198 = vand.u32 %v1197, 4294901760
    %1199 = vmatprep.subr.mxu0 %v1198
    %v1200 = vand.u32 %v219, 4294901760
    %v1201 = vsub.f32 %v219, %v1200
    %v1202 = vand.u32 %v1201, 4294901760
    %1203 = vmatpush1.msra.mxu0 %v1202
    %1204 = vmatprep.subr.mxu0 0.0
    %1205 = vmatpush1.msra.mxu0 0.0
    %1206 = vmatprep.subr.mxu0 0.0
    %1207 = vmatpush1.msra.mxu0 0.0
    %1208 = vmatprep.subr.mxu0 0.0
    %1209 = vmatpush1.msra.mxu0 0.0
    %1210 = vmatprep.subr.mxu0 0.0
    %1211 = vmatpush1.msra.mxu0 0.0
    %1212 = vmatprep.subr.mxu0 0.0
    %1213 = vmatpush1.msra.mxu0 0.0
    %1214 = vmatprep.subr.mxu0 0.0
    %1215 = vmatpush1.msra.mxu0 0.0
    %1216 = vmatprep.subr.mxu0 0.0
    %1217 = vmatpush1.msra.mxu0 0.0
    %1218 = vmatprep.subr.mxu0 0.0
    %1219 = vmatpush1.msra.mxu0 0.0
    %1220 = vmatprep.subr.mxu0 0.0
    %1221 = vmatpush1.msra.mxu0 0.0
    %1222 = vmatprep.subr.mxu0 0.0
    %1223 = vmatpush1.msra.mxu0 0.0
    %1224 = vmatprep.subr.mxu0 0.0
    %1225 = vmatpush1.msra.mxu0 0.0
    %1226 = vmatprep.subr.mxu0 0.0
    %1227 = vmatpush1.msra.mxu0 0.0
    %1228 = vmatprep.subr.mxu0 0.0
    %1229 = vmatpush1.msra.mxu0 0.0
    %1230 = vmatprep.subr.mxu0 0.0
    %1231 = vmatpush1.msra.mxu0 0.0
    %1232 = vmatprep.subr.mxu0 0.0
    %1233 = vmatpush1.msra.mxu0 0.0
    %1234 = vmatprep.subr.mxu0 0.0
    %1235 = vmatpush1.msra.mxu0 0.0
    %1236 = vmatprep.subr.mxu0 0.0
    %1237 = vmatpush1.msra.mxu0 0.0
    %1238 = vmatprep.subr.mxu0 0.0
    %1239 = vmatpush1.msra.mxu0 0.0
    %1240 = vmatprep.subr.mxu0 0.0
    %1241 = vmatpush1.msra.mxu0 0.0
    %1242 = vmatprep.subr.mxu0 0.0
    %1243 = vmatpush1.msra.mxu0 0.0
    %1244 = vmatprep.subr.mxu0 0.0
    %1245 = vmatpush1.msra.mxu0 0.0
    %1246 = vmatprep.subr.mxu0 0.0
    %1247 = vmatpush1.msra.mxu0 0.0
    %1248 = vmatprep.subr.mxu0 0.0
    %1249 = vmatpush1.msra.mxu0 0.0
    %1250 = vmatprep.subr.mxu0 0.0
    %1251 = vmatpush1.msra.mxu0 0.0
    %1252 = vmatprep.subr.mxu0 0.0
    %1253 = vmatpush1.msra.mxu0 0.0
    %1254 = vmatprep.subr.mxu0 0.0
    %1255 = vmatpush1.msra.mxu0 0.0
    %1256 = vmatprep.subr.mxu0 0.0
    %1257 = vmatpush1.msra.mxu0 0.0
    %1258 = vmatprep.subr.mxu0 0.0
    %1259 = vmatpush1.msra.mxu0 0.0
    %1260 = vmatprep.mubr.f32.mxu0 0.0
    %v1261 = vand.u32 %v260, 4294901760
    %1262 = vmatmul.mubr.f32.gmra.mrb[0].mxu0 %v1261
    %v1263 = vpop.f32.mrb[0].mxu0
    %v1264 = vadd.f32 %v1168, %v1263
    %v1265 = vpop.f32.mrb[0].mxu0
    %v1266 = vadd.f32 %v1170, %v1265
    %1267 = vdwg.mxu0
    %v1268 = vand.u32 %v196, 4294901760
    %1269 = vmatprep.subr.mxu0 %v1268
    %v1270 = vand.u32 %v195, 4294901760
    %1271 = vmatpush1.msra.mxu0 %v1270
    %v1272 = vand.u32 %v204, 4294901760
    %1273 = vmatprep.subr.mxu0 %v1272
    %v1274 = vand.u32 %v203, 4294901760
    %1275 = vmatpush1.msra.mxu0 %v1274
    %v1276 = vand.u32 %v212, 4294901760
    %1277 = vmatprep.subr.mxu0 %v1276
    %v1278 = vand.u32 %v211, 4294901760
    %1279 = vmatpush1.msra.mxu0 %v1278
    %v1280 = vand.u32 %v220, 4294901760
    %1281 = vmatprep.subr.mxu0 %v1280
    %v1282 = vand.u32 %v219, 4294901760
    %1283 = vmatpush1.msra.mxu0 %v1282
    %1284 = vmatprep.subr.mxu0 0.0
    %1285 = vmatpush1.msra.mxu0 0.0
    %1286 = vmatprep.subr.mxu0 0.0
    %1287 = vmatpush1.msra.mxu0 0.0
    %1288 = vmatprep.subr.mxu0 0.0
    %1289 = vmatpush1.msra.mxu0 0.0
    %1290 = vmatprep.subr.mxu0 0.0
    %1291 = vmatpush1.msra.mxu0 0.0
    %1292 = vmatprep.subr.mxu0 0.0
    %1293 = vmatpush1.msra.mxu0 0.0
    %1294 = vmatprep.subr.mxu0 0.0
    %1295 = vmatpush1.msra.mxu0 0.0
    %1296 = vmatprep.subr.mxu0 0.0
    %1297 = vmatpush1.msra.mxu0 0.0
    %1298 = vmatprep.subr.mxu0 0.0
    %1299 = vmatpush1.msra.mxu0 0.0
    %1300 = vmatprep.subr.mxu0 0.0
    %1301 = vmatpush1.msra.mxu0 0.0
    %1302 = vmatprep.subr.mxu0 0.0
    %1303 = vmatpush1.msra.mxu0 0.0
    %1304 = vmatprep.subr.mxu0 0.0
    %1305 = vmatpush1.msra.mxu0 0.0
    %1306 = vmatprep.subr.mxu0 0.0
    %1307 = vmatpush1.msra.mxu0 0.0
    %1308 = vmatprep.subr.mxu0 0.0
    %1309 = vmatpush1.msra.mxu0 0.0
    %1310 = vmatprep.subr.mxu0 0.0
    %1311 = vmatpush1.msra.mxu0 0.0
    %1312 = vmatprep.subr.mxu0 0.0
    %1313 = vmatpush1.msra.mxu0 0.0
    %1314 = vmatprep.subr.mxu0 0.0
    %1315 = vmatpush1.msra.mxu0 0.0
    %1316 = vmatprep.subr.mxu0 0.0
    %1317 = vmatpush1.msra.mxu0 0.0
    %1318 = vmatprep.subr.mxu0 0.0
    %1319 = vmatpush1.msra.mxu0 0.0
    %1320 = vmatprep.subr.mxu0 0.0
    %1321 = vmatpush1.msra.mxu0 0.0
    %1322 = vmatprep.subr.mxu0 0.0
    %1323 = vmatpush1.msra.mxu0 0.0
    %1324 = vmatprep.subr.mxu0 0.0
    %1325 = vmatpush1.msra.mxu0 0.0
    %1326 = vmatprep.subr.mxu0 0.0
    %1327 = vmatpush1.msra.mxu0 0.0
    %1328 = vmatprep.subr.mxu0 0.0
    %1329 = vmatpush1.msra.mxu0 0.0
    %1330 = vmatprep.subr.mxu0 0.0
    %1331 = vmatpush1.msra.mxu0 0.0
    %1332 = vmatprep.subr.mxu0 0.0
    %1333 = vmatpush1.msra.mxu0 0.0
    %1334 = vmatprep.subr.mxu0 0.0
    %1335 = vmatpush1.msra.mxu0 0.0
    %1336 = vmatprep.subr.mxu0 0.0
    %1337 = vmatpush1.msra.mxu0 0.0
    %1338 = vmatprep.subr.mxu0 0.0
    %1339 = vmatpush1.msra.mxu0 0.0
    %1340 = vmatprep.mubr.f32.mxu0 0.0
    %v1341 = vand.u32 %v260, 4294901760
    %1342 = vmatmul.mubr.f32.gmra.mrb[0].mxu0 %v1341
    %v1343 = vpop.f32.mrb[0].mxu0
    %v1344 = vadd.f32 %v1264, %v1343
    %v1345 = vpop.f32.mrb[0].mxu0
    %v1346 = vadd.f32 %v1266, %v1345
    %1347 = vdwg.mxu0
    %v1348 = vand.u32 %v198, 4294901760
    %1349 = vmatprep.subr.mxu0 %v1348
    %v1350 = vand.u32 %v197, 4294901760
    %1351 = vmatpush1.msra.mxu0 %v1350
    %v1352 = vand.u32 %v206, 4294901760
    %1353 = vmatprep.subr.mxu0 %v1352
    %v1354 = vand.u32 %v205, 4294901760
    %1355 = vmatpush1.msra.mxu0 %v1354
    %v1356 = vand.u32 %v214, 4294901760
    %1357 = vmatprep.subr.mxu0 %v1356
    %v1358 = vand.u32 %v213, 4294901760
    %1359 = vmatpush1.msra.mxu0 %v1358
    %v1360 = vand.u32 %v222, 4294901760
    %1361 = vmatprep.subr.mxu0 %v1360
    %v1362 = vand.u32 %v221, 4294901760
    %1363 = vmatpush1.msra.mxu0 %v1362
    %1364 = vmatprep.subr.mxu0 0.0
    %1365 = vmatpush1.msra.mxu0 0.0
    %1366 = vmatprep.subr.mxu0 0.0
    %1367 = vmatpush1.msra.mxu0 0.0
    %1368 = vmatprep.subr.mxu0 0.0
    %1369 = vmatpush1.msra.mxu0 0.0
    %1370 = vmatprep.subr.mxu0 0.0
    %1371 = vmatpush1.msra.mxu0 0.0
    %1372 = vmatprep.subr.mxu0 0.0
    %1373 = vmatpush1.msra.mxu0 0.0
    %1374 = vmatprep.subr.mxu0 0.0
    %1375 = vmatpush1.msra.mxu0 0.0
    %1376 = vmatprep.subr.mxu0 0.0
    %1377 = vmatpush1.msra.mxu0 0.0
    %1378 = vmatprep.subr.mxu0 0.0
    %1379 = vmatpush1.msra.mxu0 0.0
    %1380 = vmatprep.subr.mxu0 0.0
    %1381 = vmatpush1.msra.mxu0 0.0
    %1382 = vmatprep.subr.mxu0 0.0
    %1383 = vmatpush1.msra.mxu0 0.0
    %1384 = vmatprep.subr.mxu0 0.0
    %1385 = vmatpush1.msra.mxu0 0.0
    %1386 = vmatprep.subr.mxu0 0.0
    %1387 = vmatpush1.msra.mxu0 0.0
    %1388 = vmatprep.subr.mxu0 0.0
    %1389 = vmatpush1.msra.mxu0 0.0
    %1390 = vmatprep.subr.mxu0 0.0
    %1391 = vmatpush1.msra.mxu0 0.0
    %1392 = vmatprep.subr.mxu0 0.0
    %1393 = vmatpush1.msra.mxu0 0.0
    %1394 = vmatprep.subr.mxu0 0.0
    %1395 = vmatpush1.msra.mxu0 0.0
    %1396 = vmatprep.subr.mxu0 0.0
    %1397 = vmatpush1.msra.mxu0 0.0
    %1398 = vmatprep.subr.mxu0 0.0
    %1399 = vmatpush1.msra.mxu0 0.0
    %1400 = vmatprep.subr.mxu0 0.0
    %1401 = vmatpush1.msra.mxu0 0.0
    %1402 = vmatprep.subr.mxu0 0.0
    %1403 = vmatpush1.msra.mxu0 0.0
    %1404 = vmatprep.subr.mxu0 0.0
    %1405 = vmatpush1.msra.mxu0 0.0
    %1406 = vmatprep.subr.mxu0 0.0
    %1407 = vmatpush1.msra.mxu0 0.0
    %1408 = vmatprep.subr.mxu0 0.0
    %1409 = vmatpush1.msra.mxu0 0.0
    %1410 = vmatprep.subr.mxu0 0.0
    %1411 = vmatpush1.msra.mxu0 0.0
    %1412 = vmatprep.subr.mxu0 0.0
    %1413 = vmatpush1.msra.mxu0 0.0
    %1414 = vmatprep.subr.mxu0 0.0
    %1415 = vmatpush1.msra.mxu0 0.0
    %1416 = vmatprep.subr.mxu0 0.0
    %1417 = vmatpush1.msra.mxu0 0.0
    %1418 = vmatprep.subr.mxu0 0.0
    %1419 = vmatpush1.msra.mxu0 0.0
    %1420 = vmatprep.mubr.f32.mxu0 0.0
    %v1421 = vand.u32 %v260, 4294901760
    %v1422 = vsub.f32 %v260, %v1421
    %v1423 = vand.u32 %v1422, 4294901760
    %v1424 = vsub.f32 %v1422, %v1423
    %v1425 = vand.u32 %v1424, 4294901760
    %1426 = vmatmul.mubr.f32.gmra.mrb[0].mxu0 %v1425
    %v1427 = vpop.f32.mrb[0].mxu0
    %v1428 = vadd.f32 0.0, %v1427
    %v1429 = vpop.f32.mrb[0].mxu0
    %v1430 = vadd.f32 0.0, %v1429
    %1431 = vdwg.mxu0
    %v1432 = vand.u32 %v198, 4294901760
    %v1433 = vsub.f32 %v198, %v1432
    %v1434 = vand.u32 %v1433, 4294901760
    %v1435 = vsub.f32 %v1433, %v1434
    %v1436 = vand.u32 %v1435, 4294901760
    %1437 = vmatprep.subr.mxu0 %v1436
    %v1438 = vand.u32 %v197, 4294901760
    %v1439 = vsub.f32 %v197, %v1438
    %v1440 = vand.u32 %v1439, 4294901760
    %v1441 = vsub.f32 %v1439, %v1440
    %v1442 = vand.u32 %v1441, 4294901760
    %1443 = vmatpush1.msra.mxu0 %v1442
    %v1444 = vand.u32 %v206, 4294901760
    %v1445 = vsub.f32 %v206, %v1444
    %v1446 = vand.u32 %v1445, 4294901760
    %v1447 = vsub.f32 %v1445, %v1446
    %v1448 = vand.u32 %v1447, 4294901760
    %1449 = vmatprep.subr.mxu0 %v1448
    %v1450 = vand.u32 %v205, 4294901760
    %v1451 = vsub.f32 %v205, %v1450
    %v1452 = vand.u32 %v1451, 4294901760
    %v1453 = vsub.f32 %v1451, %v1452
    %v1454 = vand.u32 %v1453, 4294901760
    %1455 = vmatpush1.msra.mxu0 %v1454
    %v1456 = vand.u32 %v214, 4294901760
    %v1457 = vsub.f32 %v214, %v1456
    %v1458 = vand.u32 %v1457, 4294901760
    %v1459 = vsub.f32 %v1457, %v1458
    %v1460 = vand.u32 %v1459, 4294901760
    %1461 = vmatprep.subr.mxu0 %v1460
    %v1462 = vand.u32 %v213, 4294901760
    %v1463 = vsub.f32 %v213, %v1462
    %v1464 = vand.u32 %v1463, 4294901760
    %v1465 = vsub.f32 %v1463, %v1464
    %v1466 = vand.u32 %v1465, 4294901760
    %1467 = vmatpush1.msra.mxu0 %v1466
    %v1468 = vand.u32 %v222, 4294901760
    %v1469 = vsub.f32 %v222, %v1468
    %v1470 = vand.u32 %v1469, 4294901760
    %v1471 = vsub.f32 %v1469, %v1470
    %v1472 = vand.u32 %v1471, 4294901760
    %1473 = vmatprep.subr.mxu0 %v1472
    %v1474 = vand.u32 %v221, 4294901760
    %v1475 = vsub.f32 %v221, %v1474
    %v1476 = vand.u32 %v1475, 4294901760
    %v1477 = vsub.f32 %v1475, %v1476
    %v1478 = vand.u32 %v1477, 4294901760
    %1479 = vmatpush1.msra.mxu0 %v1478
    %1480 = vmatprep.subr.mxu0 0.0
    %1481 = vmatpush1.msra.mxu0 0.0
    %1482 = vmatprep.subr.mxu0 0.0
    %1483 = vmatpush1.msra.mxu0 0.0
    %1484 = vmatprep.subr.mxu0 0.0
    %1485 = vmatpush1.msra.mxu0 0.0
    %1486 = vmatprep.subr.mxu0 0.0
    %1487 = vmatpush1.msra.mxu0 0.0
    %1488 = vmatprep.subr.mxu0 0.0
    %1489 = vmatpush1.msra.mxu0 0.0
    %1490 = vmatprep.subr.mxu0 0.0
    %1491 = vmatpush1.msra.mxu0 0.0
    %1492 = vmatprep.subr.mxu0 0.0
    %1493 = vmatpush1.msra.mxu0 0.0
    %1494 = vmatprep.subr.mxu0 0.0
    %1495 = vmatpush1.msra.mxu0 0.0
    %1496 = vmatprep.subr.mxu0 0.0
    %1497 = vmatpush1.msra.mxu0 0.0
    %1498 = vmatprep.subr.mxu0 0.0
    %1499 = vmatpush1.msra.mxu0 0.0
    %1500 = vmatprep.subr.mxu0 0.0
    %1501 = vmatpush1.msra.mxu0 0.0
    %1502 = vmatprep.subr.mxu0 0.0
    %1503 = vmatpush1.msra.mxu0 0.0
    %1504 = vmatprep.subr.mxu0 0.0
    %1505 = vmatpush1.msra.mxu0 0.0
    %1506 = vmatprep.subr.mxu0 0.0
    %1507 = vmatpush1.msra.mxu0 0.0
    %1508 = vmatprep.subr.mxu0 0.0
    %1509 = vmatpush1.msra.mxu0 0.0
    %1510 = vmatprep.subr.mxu0 0.0
    %1511 = vmatpush1.msra.mxu0 0.0
    %1512 = vmatprep.subr.mxu0 0.0
    %1513 = vmatpush1.msra.mxu0 0.0
    %1514 = vmatprep.subr.mxu0 0.0
    %1515 = vmatpush1.msra.mxu0 0.0
    %1516 = vmatprep.subr.mxu0 0.0
    %1517 = vmatpush1.msra.mxu0 0.0
    %1518 = vmatprep.subr.mxu0 0.0
    %1519 = vmatpush1.msra.mxu0 0.0
    %1520 = vmatprep.subr.mxu0 0.0
    %1521 = vmatpush1.msra.mxu0 0.0
    %1522 = vmatprep.subr.mxu0 0.0
    %1523 = vmatpush1.msra.mxu0 0.0
    %1524 = vmatprep.subr.mxu0 0.0
    %1525 = vmatpush1.msra.mxu0 0.0
    %1526 = vmatprep.subr.mxu0 0.0
    %1527 = vmatpush1.msra.mxu0 0.0
    %1528 = vmatprep.subr.mxu0 0.0
    %1529 = vmatpush1.msra.mxu0 0.0
    %1530 = vmatprep.subr.mxu0 0.0
    %1531 = vmatpush1.msra.mxu0 0.0
    %1532 = vmatprep.subr.mxu0 0.0
    %1533 = vmatpush1.msra.mxu0 0.0
    %1534 = vmatprep.subr.mxu0 0.0
    %1535 = vmatpush1.msra.mxu0 0.0
    %1536 = vmatprep.mubr.f32.mxu0 0.0
    %v1537 = vand.u32 %v260, 4294901760
    %1538 = vmatmul.mubr.f32.gmra.mrb[0].mxu0 %v1537
    %v1539 = vpop.f32.mrb[0].mxu0
    %v1540 = vadd.f32 %v1428, %v1539
    %v1541 = vpop.f32.mrb[0].mxu0
    %v1542 = vadd.f32 %v1430, %v1541
    %1543 = vdwg.mxu0
    %v1544 = vand.u32 %v198, 4294901760
    %v1545 = vsub.f32 %v198, %v1544
    %1546 = vmatprep.subr.mxu0 %v1545
    %v1547 = vand.u32 %v197, 4294901760
    %v1548 = vsub.f32 %v197, %v1547
    %1549 = vmatpush1.msra.mxu0 %v1548
    %v1550 = vand.u32 %v206, 4294901760
    %v1551 = vsub.f32 %v206, %v1550
    %1552 = vmatprep.subr.mxu0 %v1551
    %v1553 = vand.u32 %v205, 4294901760
    %v1554 = vsub.f32 %v205, %v1553
    %1555 = vmatpush1.msra.mxu0 %v1554
    %v1556 = vand.u32 %v214, 4294901760
    %v1557 = vsub.f32 %v214, %v1556
    %1558 = vmatprep.subr.mxu0 %v1557
    %v1559 = vand.u32 %v213, 4294901760
    %v1560 = vsub.f32 %v213, %v1559
    %1561 = vmatpush1.msra.mxu0 %v1560
    %v1562 = vand.u32 %v222, 4294901760
    %v1563 = vsub.f32 %v222, %v1562
    %1564 = vmatprep.subr.mxu0 %v1563
    %v1565 = vand.u32 %v221, 4294901760
    %v1566 = vsub.f32 %v221, %v1565
    %1567 = vmatpush1.msra.mxu0 %v1566
    %1568 = vmatprep.subr.mxu0 0.0
    %1569 = vmatpush1.msra.mxu0 0.0
    %1570 = vmatprep.subr.mxu0 0.0
    %1571 = vmatpush1.msra.mxu0 0.0
    %1572 = vmatprep.subr.mxu0 0.0
    %1573 = vmatpush1.msra.mxu0 0.0
    %1574 = vmatprep.subr.mxu0 0.0
    %1575 = vmatpush1.msra.mxu0 0.0
    %1576 = vmatprep.subr.mxu0 0.0
    %1577 = vmatpush1.msra.mxu0 0.0
    %1578 = vmatprep.subr.mxu0 0.0
    %1579 = vmatpush1.msra.mxu0 0.0
    %1580 = vmatprep.subr.mxu0 0.0
    %1581 = vmatpush1.msra.mxu0 0.0
    %1582 = vmatprep.subr.mxu0 0.0
    %1583 = vmatpush1.msra.mxu0 0.0
    %1584 = vmatprep.subr.mxu0 0.0
    %1585 = vmatpush1.msra.mxu0 0.0
    %1586 = vmatprep.subr.mxu0 0.0
    %1587 = vmatpush1.msra.mxu0 0.0
    %1588 = vmatprep.subr.mxu0 0.0
    %1589 = vmatpush1.msra.mxu0 0.0
    %1590 = vmatprep.subr.mxu0 0.0
    %1591 = vmatpush1.msra.mxu0 0.0
    %1592 = vmatprep.subr.mxu0 0.0
    %1593 = vmatpush1.msra.mxu0 0.0
    %1594 = vmatprep.subr.mxu0 0.0
    %1595 = vmatpush1.msra.mxu0 0.0
    %1596 = vmatprep.subr.mxu0 0.0
    %1597 = vmatpush1.msra.mxu0 0.0
    %1598 = vmatprep.subr.mxu0 0.0
    %1599 = vmatpush1.msra.mxu0 0.0
    %1600 = vmatprep.subr.mxu0 0.0
    %1601 = vmatpush1.msra.mxu0 0.0
    %1602 = vmatprep.subr.mxu0 0.0
    %1603 = vmatpush1.msra.mxu0 0.0
    %1604 = vmatprep.subr.mxu0 0.0
    %1605 = vmatpush1.msra.mxu0 0.0
    %1606 = vmatprep.subr.mxu0 0.0
    %1607 = vmatpush1.msra.mxu0 0.0
    %1608 = vmatprep.subr.mxu0 0.0
    %1609 = vmatpush1.msra.mxu0 0.0
    %1610 = vmatprep.subr.mxu0 0.0
    %1611 = vmatpush1.msra.mxu0 0.0
    %1612 = vmatprep.subr.mxu0 0.0
    %1613 = vmatpush1.msra.mxu0 0.0
    %1614 = vmatprep.subr.mxu0 0.0
    %1615 = vmatpush1.msra.mxu0 0.0
    %1616 = vmatprep.subr.mxu0 0.0
    %1617 = vmatpush1.msra.mxu0 0.0
    %1618 = vmatprep.subr.mxu0 0.0
    %1619 = vmatpush1.msra.mxu0 0.0
    %1620 = vmatprep.subr.mxu0 0.0
    %1621 = vmatpush1.msra.mxu0 0.0
    %1622 = vmatprep.subr.mxu0 0.0
    %1623 = vmatpush1.msra.mxu0 0.0
    %1624 = vmatprep.mubr.f32.mxu0 0.0
    %v1625 = vand.u32 %v260, 4294901760
    %v1626 = vsub.f32 %v260, %v1625
    %1627 = vmatmul.mubr.f32.gmra.mrb[0].mxu0 %v1626
    %v1628 = vpop.f32.mrb[0].mxu0
    %v1629 = vadd.f32 %v1540, %v1628
    %v1630 = vpop.f32.mrb[0].mxu0
    %v1631 = vadd.f32 %v1542, %v1630
    %1632 = vdwg.mxu0
    %v1633 = vand.u32 %v198, 4294901760
    %1634 = vmatprep.subr.mxu0 %v1633
    %v1635 = vand.u32 %v197, 4294901760
    %1636 = vmatpush1.msra.mxu0 %v1635
    %v1637 = vand.u32 %v206, 4294901760
    %1638 = vmatprep.subr.mxu0 %v1637
    %v1639 = vand.u32 %v205, 4294901760
    %1640 = vmatpush1.msra.mxu0 %v1639
    %v1641 = vand.u32 %v214, 4294901760
    %1642 = vmatprep.subr.mxu0 %v1641
    %v1643 = vand.u32 %v213, 4294901760
    %1644 = vmatpush1.msra.mxu0 %v1643
    %v1645 = vand.u32 %v222, 4294901760
    %1646 = vmatprep.subr.mxu0 %v1645
    %v1647 = vand.u32 %v221, 4294901760
    %1648 = vmatpush1.msra.mxu0 %v1647
    %1649 = vmatprep.subr.mxu0 0.0
    %1650 = vmatpush1.msra.mxu0 0.0
    %1651 = vmatprep.subr.mxu0 0.0
    %1652 = vmatpush1.msra.mxu0 0.0
    %1653 = vmatprep.subr.mxu0 0.0
    %1654 = vmatpush1.msra.mxu0 0.0
    %1655 = vmatprep.subr.mxu0 0.0
    %1656 = vmatpush1.msra.mxu0 0.0
    %1657 = vmatprep.subr.mxu0 0.0
    %1658 = vmatpush1.msra.mxu0 0.0
    %1659 = vmatprep.subr.mxu0 0.0
    %1660 = vmatpush1.msra.mxu0 0.0
    %1661 = vmatprep.subr.mxu0 0.0
    %1662 = vmatpush1.msra.mxu0 0.0
    %1663 = vmatprep.subr.mxu0 0.0
    %1664 = vmatpush1.msra.mxu0 0.0
    %1665 = vmatprep.subr.mxu0 0.0
    %1666 = vmatpush1.msra.mxu0 0.0
    %1667 = vmatprep.subr.mxu0 0.0
    %1668 = vmatpush1.msra.mxu0 0.0
    %1669 = vmatprep.subr.mxu0 0.0
    %1670 = vmatpush1.msra.mxu0 0.0
    %1671 = vmatprep.subr.mxu0 0.0
    %1672 = vmatpush1.msra.mxu0 0.0
    %1673 = vmatprep.subr.mxu0 0.0
    %1674 = vmatpush1.msra.mxu0 0.0
    %1675 = vmatprep.subr.mxu0 0.0
    %1676 = vmatpush1.msra.mxu0 0.0
    %1677 = vmatprep.subr.mxu0 0.0
    %1678 = vmatpush1.msra.mxu0 0.0
    %1679 = vmatprep.subr.mxu0 0.0
    %1680 = vmatpush1.msra.mxu0 0.0
    %1681 = vmatprep.subr.mxu0 0.0
    %1682 = vmatpush1.msra.mxu0 0.0
    %1683 = vmatprep.subr.mxu0 0.0
    %1684 = vmatpush1.msra.mxu0 0.0
    %1685 = vmatprep.subr.mxu0 0.0
    %1686 = vmatpush1.msra.mxu0 0.0
    %1687 = vmatprep.subr.mxu0 0.0
    %1688 = vmatpush1.msra.mxu0 0.0
    %1689 = vmatprep.subr.mxu0 0.0
    %1690 = vmatpush1.msra.mxu0 0.0
    %1691 = vmatprep.subr.mxu0 0.0
    %1692 = vmatpush1.msra.mxu0 0.0
    %1693 = vmatprep.subr.mxu0 0.0
    %1694 = vmatpush1.msra.mxu0 0.0
    %1695 = vmatprep.subr.mxu0 0.0
    %1696 = vmatpush1.msra.mxu0 0.0
    %1697 = vmatprep.subr.mxu0 0.0
    %1698 = vmatpush1.msra.mxu0 0.0
    %1699 = vmatprep.subr.mxu0 0.0
    %1700 = vmatpush1.msra.mxu0 0.0
    %1701 = vmatprep.subr.mxu0 0.0
    %1702 = vmatpush1.msra.mxu0 0.0
    %1703 = vmatprep.subr.mxu0 0.0
    %1704 = vmatpush1.msra.mxu0 0.0
    %1705 = vmatprep.mubr.f32.mxu0 0.0
    %v1706 = vand.u32 %v260, 4294901760
    %v1707 = vsub.f32 %v260, %v1706
    %v1708 = vand.u32 %v1707, 4294901760
    %1709 = vmatmul.mubr.f32.gmra.mrb[0].mxu0 %v1708
    %v1710 = vpop.f32.mrb[0].mxu0
    %v1711 = vadd.f32 %v1629, %v1710
    %v1712 = vpop.f32.mrb[0].mxu0
    %v1713 = vadd.f32 %v1631, %v1712
    %1714 = vdwg.mxu0
    %v1715 = vand.u32 %v198, 4294901760
    %v1716 = vsub.f32 %v198, %v1715
    %v1717 = vand.u32 %v1716, 4294901760
    %1718 = vmatprep.subr.mxu0 %v1717
    %v1719 = vand.u32 %v197, 4294901760
    %v1720 = vsub.f32 %v197, %v1719
    %v1721 = vand.u32 %v1720, 4294901760
    %1722 = vmatpush1.msra.mxu0 %v1721
    %v1723 = vand.u32 %v206, 4294901760
    %v1724 = vsub.f32 %v206, %v1723
    %v1725 = vand.u32 %v1724, 4294901760
    %1726 = vmatprep.subr.mxu0 %v1725
    %v1727 = vand.u32 %v205, 4294901760
    %v1728 = vsub.f32 %v205, %v1727
    %v1729 = vand.u32 %v1728, 4294901760
    %1730 = vmatpush1.msra.mxu0 %v1729
    %v1731 = vand.u32 %v214, 4294901760
    %v1732 = vsub.f32 %v214, %v1731
    %v1733 = vand.u32 %v1732, 4294901760
    %1734 = vmatprep.subr.mxu0 %v1733
    %v1735 = vand.u32 %v213, 4294901760
    %v1736 = vsub.f32 %v213, %v1735
    %v1737 = vand.u32 %v1736, 4294901760
    %1738 = vmatpush1.msra.mxu0 %v1737
    %v1739 = vand.u32 %v222, 4294901760
    %v1740 = vsub.f32 %v222, %v1739
    %v1741 = vand.u32 %v1740, 4294901760
    %1742 = vmatprep.subr.mxu0 %v1741
    %v1743 = vand.u32 %v221, 4294901760
    %v1744 = vsub.f32 %v221, %v1743
    %v1745 = vand.u32 %v1744, 4294901760
    %1746 = vmatpush1.msra.mxu0 %v1745
    %1747 = vmatprep.subr.mxu0 0.0
    %1748 = vmatpush1.msra.mxu0 0.0
    %1749 = vmatprep.subr.mxu0 0.0
    %1750 = vmatpush1.msra.mxu0 0.0
    %1751 = vmatprep.subr.mxu0 0.0
    %1752 = vmatpush1.msra.mxu0 0.0
    %1753 = vmatprep.subr.mxu0 0.0
    %1754 = vmatpush1.msra.mxu0 0.0
    %1755 = vmatprep.subr.mxu0 0.0
    %1756 = vmatpush1.msra.mxu0 0.0
    %1757 = vmatprep.subr.mxu0 0.0
    %1758 = vmatpush1.msra.mxu0 0.0
    %1759 = vmatprep.subr.mxu0 0.0
    %1760 = vmatpush1.msra.mxu0 0.0
    %1761 = vmatprep.subr.mxu0 0.0
    %1762 = vmatpush1.msra.mxu0 0.0
    %1763 = vmatprep.subr.mxu0 0.0
    %1764 = vmatpush1.msra.mxu0 0.0
    %1765 = vmatprep.subr.mxu0 0.0
    %1766 = vmatpush1.msra.mxu0 0.0
    %1767 = vmatprep.subr.mxu0 0.0
    %1768 = vmatpush1.msra.mxu0 0.0
    %1769 = vmatprep.subr.mxu0 0.0
    %1770 = vmatpush1.msra.mxu0 0.0
    %1771 = vmatprep.subr.mxu0 0.0
    %1772 = vmatpush1.msra.mxu0 0.0
    %1773 = vmatprep.subr.mxu0 0.0
    %1774 = vmatpush1.msra.mxu0 0.0
    %1775 = vmatprep.subr.mxu0 0.0
    %1776 = vmatpush1.msra.mxu0 0.0
    %1777 = vmatprep.subr.mxu0 0.0
    %1778 = vmatpush1.msra.mxu0 0.0
    %1779 = vmatprep.subr.mxu0 0.0
    %1780 = vmatpush1.msra.mxu0 0.0
    %1781 = vmatprep.subr.mxu0 0.0
    %1782 = vmatpush1.msra.mxu0 0.0
    %1783 = vmatprep.subr.mxu0 0.0
    %1784 = vmatpush1.msra.mxu0 0.0
    %1785 = vmatprep.subr.mxu0 0.0
    %1786 = vmatpush1.msra.mxu0 0.0
    %1787 = vmatprep.subr.mxu0 0.0
    %1788 = vmatpush1.msra.mxu0 0.0
    %1789 = vmatprep.subr.mxu0 0.0
    %1790 = vmatpush1.msra.mxu0 0.0
    %1791 = vmatprep.subr.mxu0 0.0
    %1792 = vmatpush1.msra.mxu0 0.0
    %1793 = vmatprep.subr.mxu0 0.0
    %1794 = vmatpush1.msra.mxu0 0.0
    %1795 = vmatprep.subr.mxu0 0.0
    %1796 = vmatpush1.msra.mxu0 0.0
    %1797 = vmatprep.subr.mxu0 0.0
    %1798 = vmatpush1.msra.mxu0 0.0
    %1799 = vmatprep.subr.mxu0 0.0
    %1800 = vmatpush1.msra.mxu0 0.0
    %1801 = vmatprep.subr.mxu0 0.0
    %1802 = vmatpush1.msra.mxu0 0.0
    %1803 = vmatprep.mubr.f32.mxu0 0.0
    %v1804 = vand.u32 %v260, 4294901760
    %1805 = vmatmul.mubr.f32.gmra.mrb[0].mxu0 %v1804
    %v1806 = vpop.f32.mrb[0].mxu0
    %v1807 = vadd.f32 %v1711, %v1806
    %v1808 = vpop.f32.mrb[0].mxu0
    %v1809 = vadd.f32 %v1713, %v1808
    %1810 = vdwg.mxu0
    %v1811 = vand.u32 %v198, 4294901760
    %1812 = vmatprep.subr.mxu0 %v1811
    %v1813 = vand.u32 %v197, 4294901760
    %1814 = vmatpush1.msra.mxu0 %v1813
    %v1815 = vand.u32 %v206, 4294901760
    %1816 = vmatprep.subr.mxu0 %v1815
    %v1817 = vand.u32 %v205, 4294901760
    %1818 = vmatpush1.msra.mxu0 %v1817
    %v1819 = vand.u32 %v214, 4294901760
    %1820 = vmatprep.subr.mxu0 %v1819
    %v1821 = vand.u32 %v213, 4294901760
    %1822 = vmatpush1.msra.mxu0 %v1821
    %v1823 = vand.u32 %v222, 4294901760
    %1824 = vmatprep.subr.mxu0 %v1823
    %v1825 = vand.u32 %v221, 4294901760
    %1826 = vmatpush1.msra.mxu0 %v1825
    %1827 = vmatprep.subr.mxu0 0.0
    %1828 = vmatpush1.msra.mxu0 0.0
    %1829 = vmatprep.subr.mxu0 0.0
    %1830 = vmatpush1.msra.mxu0 0.0
    %1831 = vmatprep.subr.mxu0 0.0
    %1832 = vmatpush1.msra.mxu0 0.0
    %1833 = vmatprep.subr.mxu0 0.0
    %1834 = vmatpush1.msra.mxu0 0.0
    %1835 = vmatprep.subr.mxu0 0.0
    %1836 = vmatpush1.msra.mxu0 0.0
    %1837 = vmatprep.subr.mxu0 0.0
    %1838 = vmatpush1.msra.mxu0 0.0
    %1839 = vmatprep.subr.mxu0 0.0
    %1840 = vmatpush1.msra.mxu0 0.0
    %1841 = vmatprep.subr.mxu0 0.0
    %1842 = vmatpush1.msra.mxu0 0.0
    %1843 = vmatprep.subr.mxu0 0.0
    %1844 = vmatpush1.msra.mxu0 0.0
    %1845 = vmatprep.subr.mxu0 0.0
    %1846 = vmatpush1.msra.mxu0 0.0
    %1847 = vmatprep.subr.mxu0 0.0
    %1848 = vmatpush1.msra.mxu0 0.0
    %1849 = vmatprep.subr.mxu0 0.0
    %1850 = vmatpush1.msra.mxu0 0.0
    %1851 = vmatprep.subr.mxu0 0.0
    %1852 = vmatpush1.msra.mxu0 0.0
    %1853 = vmatprep.subr.mxu0 0.0
    %1854 = vmatpush1.msra.mxu0 0.0
    %1855 = vmatprep.subr.mxu0 0.0
    %1856 = vmatpush1.msra.mxu0 0.0
    %1857 = vmatprep.subr.mxu0 0.0
    %1858 = vmatpush1.msra.mxu0 0.0
    %1859 = vmatprep.subr.mxu0 0.0
    %1860 = vmatpush1.msra.mxu0 0.0
    %1861 = vmatprep.subr.mxu0 0.0
    %1862 = vmatpush1.msra.mxu0 0.0
    %1863 = vmatprep.subr.mxu0 0.0
    %1864 = vmatpush1.msra.mxu0 0.0
    %1865 = vmatprep.subr.mxu0 0.0
    %1866 = vmatpush1.msra.mxu0 0.0
    %1867 = vmatprep.subr.mxu0 0.0
    %1868 = vmatpush1.msra.mxu0 0.0
    %1869 = vmatprep.subr.mxu0 0.0
    %1870 = vmatpush1.msra.mxu0 0.0
    %1871 = vmatprep.subr.mxu0 0.0
    %1872 = vmatpush1.msra.mxu0 0.0
    %1873 = vmatprep.subr.mxu0 0.0
    %1874 = vmatpush1.msra.mxu0 0.0
    %1875 = vmatprep.subr.mxu0 0.0
    %1876 = vmatpush1.msra.mxu0 0.0
    %1877 = vmatprep.subr.mxu0 0.0
    %1878 = vmatpush1.msra.mxu0 0.0
    %1879 = vmatprep.subr.mxu0 0.0
    %1880 = vmatpush1.msra.mxu0 0.0
    %1881 = vmatprep.subr.mxu0 0.0
    %1882 = vmatpush1.msra.mxu0 0.0
    %1883 = vmatprep.mubr.f32.mxu0 0.0
    %v1884 = vand.u32 %v260, 4294901760
    %1885 = vmatmul.mubr.f32.gmra.mrb[0].mxu0 %v1884
    %v1886 = vpop.f32.mrb[0].mxu0
    %v1887 = vadd.f32 %v1807, %v1886
    %v1888 = vpop.f32.mrb[0].mxu0
    %v1889 = vadd.f32 %v1809, %v1888
    %1890 = vdwg.mxu0
    %v1891 = vand.u32 %v200, 4294901760
    %1892 = vmatprep.subr.mxu0 %v1891
    %v1893 = vand.u32 %v199, 4294901760
    %1894 = vmatpush1.msra.mxu0 %v1893
    %v1895 = vand.u32 %v208, 4294901760
    %1896 = vmatprep.subr.mxu0 %v1895
    %v1897 = vand.u32 %v207, 4294901760
    %1898 = vmatpush1.msra.mxu0 %v1897
    %v1899 = vand.u32 %v216, 4294901760
    %1900 = vmatprep.subr.mxu0 %v1899
    %v1901 = vand.u32 %v215, 4294901760
    %1902 = vmatpush1.msra.mxu0 %v1901
    %v1903 = vand.u32 %v224, 4294901760
    %1904 = vmatprep.subr.mxu0 %v1903
    %v1905 = vand.u32 %v223, 4294901760
    %1906 = vmatpush1.msra.mxu0 %v1905
    %1907 = vmatprep.subr.mxu0 0.0
    %1908 = vmatpush1.msra.mxu0 0.0
    %1909 = vmatprep.subr.mxu0 0.0
    %1910 = vmatpush1.msra.mxu0 0.0
    %1911 = vmatprep.subr.mxu0 0.0
    %1912 = vmatpush1.msra.mxu0 0.0
    %1913 = vmatprep.subr.mxu0 0.0
    %1914 = vmatpush1.msra.mxu0 0.0
    %1915 = vmatprep.subr.mxu0 0.0
    %1916 = vmatpush1.msra.mxu0 0.0
    %1917 = vmatprep.subr.mxu0 0.0
    %1918 = vmatpush1.msra.mxu0 0.0
    %1919 = vmatprep.subr.mxu0 0.0
    %1920 = vmatpush1.msra.mxu0 0.0
    %1921 = vmatprep.subr.mxu0 0.0
    %1922 = vmatpush1.msra.mxu0 0.0
    %1923 = vmatprep.subr.mxu0 0.0
    %1924 = vmatpush1.msra.mxu0 0.0
    %1925 = vmatprep.subr.mxu0 0.0
    %1926 = vmatpush1.msra.mxu0 0.0
    %1927 = vmatprep.subr.mxu0 0.0
    %1928 = vmatpush1.msra.mxu0 0.0
    %1929 = vmatprep.subr.mxu0 0.0
    %1930 = vmatpush1.msra.mxu0 0.0
    %1931 = vmatprep.subr.mxu0 0.0
    %1932 = vmatpush1.msra.mxu0 0.0
    %1933 = vmatprep.subr.mxu0 0.0
    %1934 = vmatpush1.msra.mxu0 0.0
    %1935 = vmatprep.subr.mxu0 0.0
    %1936 = vmatpush1.msra.mxu0 0.0
    %1937 = vmatprep.subr.mxu0 0.0
    %1938 = vmatpush1.msra.mxu0 0.0
    %1939 = vmatprep.subr.mxu0 0.0
    %1940 = vmatpush1.msra.mxu0 0.0
    %1941 = vmatprep.subr.mxu0 0.0
    %1942 = vmatpush1.msra.mxu0 0.0
    %1943 = vmatprep.subr.mxu0 0.0
    %1944 = vmatpush1.msra.mxu0 0.0
    %1945 = vmatprep.subr.mxu0 0.0
    %1946 = vmatpush1.msra.mxu0 0.0
    %1947 = vmatprep.subr.mxu0 0.0
    %1948 = vmatpush1.msra.mxu0 0.0
    %1949 = vmatprep.subr.mxu0 0.0
    %1950 = vmatpush1.msra.mxu0 0.0
    %1951 = vmatprep.subr.mxu0 0.0
    %1952 = vmatpush1.msra.mxu0 0.0
    %1953 = vmatprep.subr.mxu0 0.0
    %1954 = vmatpush1.msra.mxu0 0.0
    %1955 = vmatprep.subr.mxu0 0.0
    %1956 = vmatpush1.msra.mxu0 0.0
    %1957 = vmatprep.subr.mxu0 0.0
    %1958 = vmatpush1.msra.mxu0 0.0
    %1959 = vmatprep.subr.mxu0 0.0
    %1960 = vmatpush1.msra.mxu0 0.0
    %1961 = vmatprep.subr.mxu0 0.0
    %1962 = vmatpush1.msra.mxu0 0.0
    %1963 = vmatprep.mubr.f32.mxu0 0.0
    %v1964 = vand.u32 %v260, 4294901760
    %v1965 = vsub.f32 %v260, %v1964
    %v1966 = vand.u32 %v1965, 4294901760
    %v1967 = vsub.f32 %v1965, %v1966
    %v1968 = vand.u32 %v1967, 4294901760
    %1969 = vmatmul.mubr.f32.gmra.mrb[0].mxu0 %v1968
    %v1970 = vpop.f32.mrb[0].mxu0
    %v1971 = vadd.f32 0.0, %v1970
    %v1972 = vpop.f32.mrb[0].mxu0
    %v1973 = vadd.f32 0.0, %v1972
    %1974 = vdwg.mxu0
    %v1975 = vand.u32 %v200, 4294901760
    %v1976 = vsub.f32 %v200, %v1975
    %v1977 = vand.u32 %v1976, 4294901760
    %v1978 = vsub.f32 %v1976, %v1977
    %v1979 = vand.u32 %v1978, 4294901760
    %1980 = vmatprep.subr.mxu0 %v1979
    %v1981 = vand.u32 %v199, 4294901760
    %v1982 = vsub.f32 %v199, %v1981
    %v1983 = vand.u32 %v1982, 4294901760
    %v1984 = vsub.f32 %v1982, %v1983
    %v1985 = vand.u32 %v1984, 4294901760
    %1986 = vmatpush1.msra.mxu0 %v1985
    %v1987 = vand.u32 %v208, 4294901760
    %v1988 = vsub.f32 %v208, %v1987
    %v1989 = vand.u32 %v1988, 4294901760
    %v1990 = vsub.f32 %v1988, %v1989
    %v1991 = vand.u32 %v1990, 4294901760
    %1992 = vmatprep.subr.mxu0 %v1991
    %v1993 = vand.u32 %v207, 4294901760
    %v1994 = vsub.f32 %v207, %v1993
    %v1995 = vand.u32 %v1994, 4294901760
    %v1996 = vsub.f32 %v1994, %v1995
    %v1997 = vand.u32 %v1996, 4294901760
    %1998 = vmatpush1.msra.mxu0 %v1997
    %v1999 = vand.u32 %v216, 4294901760
    %v2000 = vsub.f32 %v216, %v1999
    %v2001 = vand.u32 %v2000, 4294901760
    %v2002 = vsub.f32 %v2000, %v2001
    %v2003 = vand.u32 %v2002, 4294901760
    %2004 = vmatprep.subr.mxu0 %v2003
    %v2005 = vand.u32 %v215, 4294901760
    %v2006 = vsub.f32 %v215, %v2005
    %v2007 = vand.u32 %v2006, 4294901760
    %v2008 = vsub.f32 %v2006, %v2007
    %v2009 = vand.u32 %v2008, 4294901760
    %2010 = vmatpush1.msra.mxu0 %v2009
    %v2011 = vand.u32 %v224, 4294901760
    %v2012 = vsub.f32 %v224, %v2011
    %v2013 = vand.u32 %v2012, 4294901760
    %v2014 = vsub.f32 %v2012, %v2013
    %v2015 = vand.u32 %v2014, 4294901760
    %2016 = vmatprep.subr.mxu0 %v2015
    %v2017 = vand.u32 %v223, 4294901760
    %v2018 = vsub.f32 %v223, %v2017
    %v2019 = vand.u32 %v2018, 4294901760
    %v2020 = vsub.f32 %v2018, %v2019
    %v2021 = vand.u32 %v2020, 4294901760
    %2022 = vmatpush1.msra.mxu0 %v2021
    %2023 = vmatprep.subr.mxu0 0.0
    %2024 = vmatpush1.msra.mxu0 0.0
    %2025 = vmatprep.subr.mxu0 0.0
    %2026 = vmatpush1.msra.mxu0 0.0
    %2027 = vmatprep.subr.mxu0 0.0
    %2028 = vmatpush1.msra.mxu0 0.0
    %2029 = vmatprep.subr.mxu0 0.0
    %2030 = vmatpush1.msra.mxu0 0.0
    %2031 = vmatprep.subr.mxu0 0.0
    %2032 = vmatpush1.msra.mxu0 0.0
    %2033 = vmatprep.subr.mxu0 0.0
    %2034 = vmatpush1.msra.mxu0 0.0
    %2035 = vmatprep.subr.mxu0 0.0
    %2036 = vmatpush1.msra.mxu0 0.0
    %2037 = vmatprep.subr.mxu0 0.0
    %2038 = vmatpush1.msra.mxu0 0.0
    %2039 = vmatprep.subr.mxu0 0.0
    %2040 = vmatpush1.msra.mxu0 0.0
    %2041 = vmatprep.subr.mxu0 0.0
    %2042 = vmatpush1.msra.mxu0 0.0
    %2043 = vmatprep.subr.mxu0 0.0
    %2044 = vmatpush1.msra.mxu0 0.0
    %2045 = vmatprep.subr.mxu0 0.0
    %2046 = vmatpush1.msra.mxu0 0.0
    %2047 = vmatprep.subr.mxu0 0.0
    %2048 = vmatpush1.msra.mxu0 0.0
    %2049 = vmatprep.subr.mxu0 0.0
    %2050 = vmatpush1.msra.mxu0 0.0
    %2051 = vmatprep.subr.mxu0 0.0
    %2052 = vmatpush1.msra.mxu0 0.0
    %2053 = vmatprep.subr.mxu0 0.0
    %2054 = vmatpush1.msra.mxu0 0.0
    %2055 = vmatprep.subr.mxu0 0.0
    %2056 = vmatpush1.msra.mxu0 0.0
    %2057 = vmatprep.subr.mxu0 0.0
    %2058 = vmatpush1.msra.mxu0 0.0
    %2059 = vmatprep.subr.mxu0 0.0
    %2060 = vmatpush1.msra.mxu0 0.0
    %2061 = vmatprep.subr.mxu0 0.0
    %2062 = vmatpush1.msra.mxu0 0.0
    %2063 = vmatprep.subr.mxu0 0.0
    %2064 = vmatpush1.msra.mxu0 0.0
    %2065 = vmatprep.subr.mxu0 0.0
    %2066 = vmatpush1.msra.mxu0 0.0
    %2067 = vmatprep.subr.mxu0 0.0
    %2068 = vmatpush1.msra.mxu0 0.0
    %2069 = vmatprep.subr.mxu0 0.0
    %2070 = vmatpush1.msra.mxu0 0.0
    %2071 = vmatprep.subr.mxu0 0.0
    %2072 = vmatpush1.msra.mxu0 0.0
    %2073 = vmatprep.subr.mxu0 0.0
    %2074 = vmatpush1.msra.mxu0 0.0
    %2075 = vmatprep.subr.mxu0 0.0
    %2076 = vmatpush1.msra.mxu0 0.0
    %2077 = vmatprep.subr.mxu0 0.0
    %2078 = vmatpush1.msra.mxu0 0.0
    %2079 = vmatprep.mubr.f32.mxu0 0.0
    %v2080 = vand.u32 %v260, 4294901760
    %2081 = vmatmul.mubr.f32.gmra.mrb[0].mxu0 %v2080
    %v2082 = vpop.f32.mrb[0].mxu0
    %v2083 = vadd.f32 %v1971, %v2082
    %v2084 = vpop.f32.mrb[0].mxu0
    %v2085 = vadd.f32 %v1973, %v2084
    %2086 = vdwg.mxu0
    %v2087 = vand.u32 %v200, 4294901760
    %v2088 = vsub.f32 %v200, %v2087
    %2089 = vmatprep.subr.mxu0 %v2088
    %v2090 = vand.u32 %v199, 4294901760
    %v2091 = vsub.f32 %v199, %v2090
    %2092 = vmatpush1.msra.mxu0 %v2091
    %v2093 = vand.u32 %v208, 4294901760
    %v2094 = vsub.f32 %v208, %v2093
    %2095 = vmatprep.subr.mxu0 %v2094
    %v2096 = vand.u32 %v207, 4294901760
    %v2097 = vsub.f32 %v207, %v2096
    %2098 = vmatpush1.msra.mxu0 %v2097
    %v2099 = vand.u32 %v216, 4294901760
    %v2100 = vsub.f32 %v216, %v2099
    %2101 = vmatprep.subr.mxu0 %v2100
    %v2102 = vand.u32 %v215, 4294901760
    %v2103 = vsub.f32 %v215, %v2102
    %2104 = vmatpush1.msra.mxu0 %v2103
    %v2105 = vand.u32 %v224, 4294901760
    %v2106 = vsub.f32 %v224, %v2105
    %2107 = vmatprep.subr.mxu0 %v2106
    %v2108 = vand.u32 %v223, 4294901760
    %v2109 = vsub.f32 %v223, %v2108
    %2110 = vmatpush1.msra.mxu0 %v2109
    %2111 = vmatprep.subr.mxu0 0.0
    %2112 = vmatpush1.msra.mxu0 0.0
    %2113 = vmatprep.subr.mxu0 0.0
    %2114 = vmatpush1.msra.mxu0 0.0
    %2115 = vmatprep.subr.mxu0 0.0
    %2116 = vmatpush1.msra.mxu0 0.0
    %2117 = vmatprep.subr.mxu0 0.0
    %2118 = vmatpush1.msra.mxu0 0.0
    %2119 = vmatprep.subr.mxu0 0.0
    %2120 = vmatpush1.msra.mxu0 0.0
    %2121 = vmatprep.subr.mxu0 0.0
    %2122 = vmatpush1.msra.mxu0 0.0
    %2123 = vmatprep.subr.mxu0 0.0
    %2124 = vmatpush1.msra.mxu0 0.0
    %2125 = vmatprep.subr.mxu0 0.0
    %2126 = vmatpush1.msra.mxu0 0.0
    %2127 = vmatprep.subr.mxu0 0.0
    %2128 = vmatpush1.msra.mxu0 0.0
    %2129 = vmatprep.subr.mxu0 0.0
    %2130 = vmatpush1.msra.mxu0 0.0
    %2131 = vmatprep.subr.mxu0 0.0
    %2132 = vmatpush1.msra.mxu0 0.0
    %2133 = vmatprep.subr.mxu0 0.0
    %2134 = vmatpush1.msra.mxu0 0.0
    %2135 = vmatprep.subr.mxu0 0.0
    %2136 = vmatpush1.msra.mxu0 0.0
    %2137 = vmatprep.subr.mxu0 0.0
    %2138 = vmatpush1.msra.mxu0 0.0
    %2139 = vmatprep.subr.mxu0 0.0
    %2140 = vmatpush1.msra.mxu0 0.0
    %2141 = vmatprep.subr.mxu0 0.0
    %2142 = vmatpush1.msra.mxu0 0.0
    %2143 = vmatprep.subr.mxu0 0.0
    %2144 = vmatpush1.msra.mxu0 0.0
    %2145 = vmatprep.subr.mxu0 0.0
    %2146 = vmatpush1.msra.mxu0 0.0
    %2147 = vmatprep.subr.mxu0 0.0
    %2148 = vmatpush1.msra.mxu0 0.0
    %2149 = vmatprep.subr.mxu0 0.0
    %2150 = vmatpush1.msra.mxu0 0.0
    %2151 = vmatprep.subr.mxu0 0.0
    %2152 = vmatpush1.msra.mxu0 0.0
    %2153 = vmatprep.subr.mxu0 0.0
    %2154 = vmatpush1.msra.mxu0 0.0
    %2155 = vmatprep.subr.mxu0 0.0
    %2156 = vmatpush1.msra.mxu0 0.0
    %2157 = vmatprep.subr.mxu0 0.0
    %2158 = vmatpush1.msra.mxu0 0.0
    %2159 = vmatprep.subr.mxu0 0.0
    %2160 = vmatpush1.msra.mxu0 0.0
    %2161 = vmatprep.subr.mxu0 0.0
    %2162 = vmatpush1.msra.mxu0 0.0
    %2163 = vmatprep.subr.mxu0 0.0
    %2164 = vmatpush1.msra.mxu0 0.0
    %2165 = vmatprep.subr.mxu0 0.0
    %2166 = vmatpush1.msra.mxu0 0.0
    %2167 = vmatprep.mubr.f32.mxu0 0.0
    %v2168 = vand.u32 %v260, 4294901760
    %v2169 = vsub.f32 %v260, %v2168
    %2170 = vmatmul.mubr.f32.gmra.mrb[0].mxu0 %v2169
    %v2171 = vpop.f32.mrb[0].mxu0
    %v2172 = vadd.f32 %v2083, %v2171
    %v2173 = vpop.f32.mrb[0].mxu0
    %v2174 = vadd.f32 %v2085, %v2173
    %2175 = vdwg.mxu0
    %v2176 = vand.u32 %v200, 4294901760
    %2177 = vmatprep.subr.mxu0 %v2176
    %v2178 = vand.u32 %v199, 4294901760
    %2179 = vmatpush1.msra.mxu0 %v2178
    %v2180 = vand.u32 %v208, 4294901760
    %2181 = vmatprep.subr.mxu0 %v2180
    %v2182 = vand.u32 %v207, 4294901760
    %2183 = vmatpush1.msra.mxu0 %v2182
    %v2184 = vand.u32 %v216, 4294901760
    %2185 = vmatprep.subr.mxu0 %v2184
    %v2186 = vand.u32 %v215, 4294901760
    %2187 = vmatpush1.msra.mxu0 %v2186
    %v2188 = vand.u32 %v224, 4294901760
    %2189 = vmatprep.subr.mxu0 %v2188
    %v2190 = vand.u32 %v223, 4294901760
    %2191 = vmatpush1.msra.mxu0 %v2190
    %2192 = vmatprep.subr.mxu0 0.0
    %2193 = vmatpush1.msra.mxu0 0.0
    %2194 = vmatprep.subr.mxu0 0.0
    %2195 = vmatpush1.msra.mxu0 0.0
    %2196 = vmatprep.subr.mxu0 0.0
    %2197 = vmatpush1.msra.mxu0 0.0
    %2198 = vmatprep.subr.mxu0 0.0
    %2199 = vmatpush1.msra.mxu0 0.0
    %2200 = vmatprep.subr.mxu0 0.0
    %2201 = vmatpush1.msra.mxu0 0.0
    %2202 = vmatprep.subr.mxu0 0.0
    %2203 = vmatpush1.msra.mxu0 0.0
    %2204 = vmatprep.subr.mxu0 0.0
    %2205 = vmatpush1.msra.mxu0 0.0
    %2206 = vmatprep.subr.mxu0 0.0
    %2207 = vmatpush1.msra.mxu0 0.0
    %2208 = vmatprep.subr.mxu0 0.0
    %2209 = vmatpush1.msra.mxu0 0.0
    %2210 = vmatprep.subr.mxu0 0.0
    %2211 = vmatpush1.msra.mxu0 0.0
    %2212 = vmatprep.subr.mxu0 0.0
    %2213 = vmatpush1.msra.mxu0 0.0
    %2214 = vmatprep.subr.mxu0 0.0
    %2215 = vmatpush1.msra.mxu0 0.0
    %2216 = vmatprep.subr.mxu0 0.0
    %2217 = vmatpush1.msra.mxu0 0.0
    %2218 = vmatprep.subr.mxu0 0.0
    %2219 = vmatpush1.msra.mxu0 0.0
    %2220 = vmatprep.subr.mxu0 0.0
    %2221 = vmatpush1.msra.mxu0 0.0
    %2222 = vmatprep.subr.mxu0 0.0
    %2223 = vmatpush1.msra.mxu0 0.0
    %2224 = vmatprep.subr.mxu0 0.0
    %2225 = vmatpush1.msra.mxu0 0.0
    %2226 = vmatprep.subr.mxu0 0.0
    %2227 = vmatpush1.msra.mxu0 0.0
    %2228 = vmatprep.subr.mxu0 0.0
    %2229 = vmatpush1.msra.mxu0 0.0
    %2230 = vmatprep.subr.mxu0 0.0
    %2231 = vmatpush1.msra.mxu0 0.0
    %2232 = vmatprep.subr.mxu0 0.0
    %2233 = vmatpush1.msra.mxu0 0.0
    %2234 = vmatprep.subr.mxu0 0.0
    %2235 = vmatpush1.msra.mxu0 0.0
    %2236 = vmatprep.subr.mxu0 0.0
    %2237 = vmatpush1.msra.mxu0 0.0
    %2238 = vmatprep.subr.mxu0 0.0
    %2239 = vmatpush1.msra.mxu0 0.0
    %2240 = vmatprep.subr.mxu0 0.0
    %2241 = vmatpush1.msra.mxu0 0.0
    %2242 = vmatprep.subr.mxu0 0.0
    %2243 = vmatpush1.msra.mxu0 0.0
    %2244 = vmatprep.subr.mxu0 0.0
    %2245 = vmatpush1.msra.mxu0 0.0
    %2246 = vmatprep.subr.mxu0 0.0
    %2247 = vmatpush1.msra.mxu0 0.0
    %2248 = vmatprep.mubr.f32.mxu0 0.0
    %v2249 = vand.u32 %v260, 4294901760
    %v2250 = vsub.f32 %v260, %v2249
    %v2251 = vand.u32 %v2250, 4294901760
    %2252 = vmatmul.mubr.f32.gmra.mrb[0].mxu0 %v2251
    %v2253 = vpop.f32.mrb[0].mxu0
    %v2254 = vadd.f32 %v2172, %v2253
    %v2255 = vpop.f32.mrb[0].mxu0
    %v2256 = vadd.f32 %v2174, %v2255
    %2257 = vdwg.mxu0
    %v2258 = vand.u32 %v200, 4294901760
    %v2259 = vsub.f32 %v200, %v2258
    %v2260 = vand.u32 %v2259, 4294901760
    %2261 = vmatprep.subr.mxu0 %v2260
    %v2262 = vand.u32 %v199, 4294901760
    %v2263 = vsub.f32 %v199, %v2262
    %v2264 = vand.u32 %v2263, 4294901760
    %2265 = vmatpush1.msra.mxu0 %v2264
    %v2266 = vand.u32 %v208, 4294901760
    %v2267 = vsub.f32 %v208, %v2266
    %v2268 = vand.u32 %v2267, 4294901760
    %2269 = vmatprep.subr.mxu0 %v2268
    %v2270 = vand.u32 %v207, 4294901760
    %v2271 = vsub.f32 %v207, %v2270
    %v2272 = vand.u32 %v2271, 4294901760
    %2273 = vmatpush1.msra.mxu0 %v2272
    %v2274 = vand.u32 %v216, 4294901760
    %v2275 = vsub.f32 %v216, %v2274
    %v2276 = vand.u32 %v2275, 4294901760
    %2277 = vmatprep.subr.mxu0 %v2276
    %v2278 = vand.u32 %v215, 4294901760
    %v2279 = vsub.f32 %v215, %v2278
    %v2280 = vand.u32 %v2279, 4294901760
    %2281 = vmatpush1.msra.mxu0 %v2280
    %v2282 = vand.u32 %v224, 4294901760
    %v2283 = vsub.f32 %v224, %v2282
    %v2284 = vand.u32 %v2283, 4294901760
    %2285 = vmatprep.subr.mxu0 %v2284
    %v2286 = vand.u32 %v223, 4294901760
    %v2287 = vsub.f32 %v223, %v2286
    %v2288 = vand.u32 %v2287, 4294901760
    %2289 = vmatpush1.msra.mxu0 %v2288
    %2290 = vmatprep.subr.mxu0 0.0
    %2291 = vmatpush1.msra.mxu0 0.0
    %2292 = vmatprep.subr.mxu0 0.0
    %2293 = vmatpush1.msra.mxu0 0.0
    %2294 = vmatprep.subr.mxu0 0.0
    %2295 = vmatpush1.msra.mxu0 0.0
    %2296 = vmatprep.subr.mxu0 0.0
    %2297 = vmatpush1.msra.mxu0 0.0
    %2298 = vmatprep.subr.mxu0 0.0
    %2299 = vmatpush1.msra.mxu0 0.0
    %2300 = vmatprep.subr.mxu0 0.0
    %2301 = vmatpush1.msra.mxu0 0.0
    %2302 = vmatprep.subr.mxu0 0.0
    %2303 = vmatpush1.msra.mxu0 0.0
    %2304 = vmatprep.subr.mxu0 0.0
    %2305 = vmatpush1.msra.mxu0 0.0
    %2306 = vmatprep.subr.mxu0 0.0
    %2307 = vmatpush1.msra.mxu0 0.0
    %2308 = vmatprep.subr.mxu0 0.0
    %2309 = vmatpush1.msra.mxu0 0.0
    %2310 = vmatprep.subr.mxu0 0.0
    %2311 = vmatpush1.msra.mxu0 0.0
    %2312 = vmatprep.subr.mxu0 0.0
    %2313 = vmatpush1.msra.mxu0 0.0
    %2314 = vmatprep.subr.mxu0 0.0
    %2315 = vmatpush1.msra.mxu0 0.0
    %2316 = vmatprep.subr.mxu0 0.0
    %2317 = vmatpush1.msra.mxu0 0.0
    %2318 = vmatprep.subr.mxu0 0.0
    %2319 = vmatpush1.msra.mxu0 0.0
    %2320 = vmatprep.subr.mxu0 0.0
    %2321 = vmatpush1.msra.mxu0 0.0
    %2322 = vmatprep.subr.mxu0 0.0
    %2323 = vmatpush1.msra.mxu0 0.0
    %2324 = vmatprep.subr.mxu0 0.0
    %2325 = vmatpush1.msra.mxu0 0.0
    %2326 = vmatprep.subr.mxu0 0.0
    %2327 = vmatpush1.msra.mxu0 0.0
    %2328 = vmatprep.subr.mxu0 0.0
    %2329 = vmatpush1.msra.mxu0 0.0
    %2330 = vmatprep.subr.mxu0 0.0
    %2331 = vmatpush1.msra.mxu0 0.0
    %2332 = vmatprep.subr.mxu0 0.0
    %2333 = vmatpush1.msra.mxu0 0.0
    %2334 = vmatprep.subr.mxu0 0.0
    %2335 = vmatpush1.msra.mxu0 0.0
    %2336 = vmatprep.subr.mxu0 0.0
    %2337 = vmatpush1.msra.mxu0 0.0
    %2338 = vmatprep.subr.mxu0 0.0
    %2339 = vmatpush1.msra.mxu0 0.0
    %2340 = vmatprep.subr.mxu0 0.0
    %2341 = vmatpush1.msra.mxu0 0.0
    %2342 = vmatprep.subr.mxu0 0.0
    %2343 = vmatpush1.msra.mxu0 0.0
    %2344 = vmatprep.subr.mxu0 0.0
    %2345 = vmatpush1.msra.mxu0 0.0
    %2346 = vmatprep.mubr.f32.mxu0 0.0
    %v2347 = vand.u32 %v260, 4294901760
    %2348 = vmatmul.mubr.f32.gmra.mrb[0].mxu0 %v2347
    %v2349 = vpop.f32.mrb[0].mxu0
    %v2350 = vadd.f32 %v2254, %v2349
    %v2351 = vpop.f32.mrb[0].mxu0
    %v2352 = vadd.f32 %v2256, %v2351
    %2353 = vdwg.mxu0
    %v2354 = vand.u32 %v200, 4294901760
    %2355 = vmatprep.subr.mxu0 %v2354
    %v2356 = vand.u32 %v199, 4294901760
    %2357 = vmatpush1.msra.mxu0 %v2356
    %v2358 = vand.u32 %v208, 4294901760
    %2359 = vmatprep.subr.mxu0 %v2358
    %v2360 = vand.u32 %v207, 4294901760
    %2361 = vmatpush1.msra.mxu0 %v2360
    %v2362 = vand.u32 %v216, 4294901760
    %2363 = vmatprep.subr.mxu0 %v2362
    %v2364 = vand.u32 %v215, 4294901760
    %2365 = vmatpush1.msra.mxu0 %v2364
    %v2366 = vand.u32 %v224, 4294901760
    %2367 = vmatprep.subr.mxu0 %v2366
    %v2368 = vand.u32 %v223, 4294901760
    %2369 = vmatpush1.msra.mxu0 %v2368
    %2370 = vmatprep.subr.mxu0 0.0
    %2371 = vmatpush1.msra.mxu0 0.0
    %2372 = vmatprep.subr.mxu0 0.0
    %2373 = vmatpush1.msra.mxu0 0.0
    %2374 = vmatprep.subr.mxu0 0.0
    %2375 = vmatpush1.msra.mxu0 0.0
    %2376 = vmatprep.subr.mxu0 0.0
    %2377 = vmatpush1.msra.mxu0 0.0
    %2378 = vmatprep.subr.mxu0 0.0
    %2379 = vmatpush1.msra.mxu0 0.0
    %2380 = vmatprep.subr.mxu0 0.0
    %2381 = vmatpush1.msra.mxu0 0.0
    %2382 = vmatprep.subr.mxu0 0.0
    %2383 = vmatpush1.msra.mxu0 0.0
    %2384 = vmatprep.subr.mxu0 0.0
    %2385 = vmatpush1.msra.mxu0 0.0
    %2386 = vmatprep.subr.mxu0 0.0
    %2387 = vmatpush1.msra.mxu0 0.0
    %2388 = vmatprep.subr.mxu0 0.0
    %2389 = vmatpush1.msra.mxu0 0.0
    %2390 = vmatprep.subr.mxu0 0.0
    %2391 = vmatpush1.msra.mxu0 0.0
    %2392 = vmatprep.subr.mxu0 0.0
    %2393 = vmatpush1.msra.mxu0 0.0
    %2394 = vmatprep.subr.mxu0 0.0
    %2395 = vmatpush1.msra.mxu0 0.0
    %2396 = vmatprep.subr.mxu0 0.0
    %2397 = vmatpush1.msra.mxu0 0.0
    %2398 = vmatprep.subr.mxu0 0.0
    %2399 = vmatpush1.msra.mxu0 0.0
    %2400 = vmatprep.subr.mxu0 0.0
    %2401 = vmatpush1.msra.mxu0 0.0
    %2402 = vmatprep.subr.mxu0 0.0
    %2403 = vmatpush1.msra.mxu0 0.0
    %2404 = vmatprep.subr.mxu0 0.0
    %2405 = vmatpush1.msra.mxu0 0.0
    %2406 = vmatprep.subr.mxu0 0.0
    %2407 = vmatpush1.msra.mxu0 0.0
    %2408 = vmatprep.subr.mxu0 0.0
    %2409 = vmatpush1.msra.mxu0 0.0
    %2410 = vmatprep.subr.mxu0 0.0
    %2411 = vmatpush1.msra.mxu0 0.0
    %2412 = vmatprep.subr.mxu0 0.0
    %2413 = vmatpush1.msra.mxu0 0.0
    %2414 = vmatprep.subr.mxu0 0.0
    %2415 = vmatpush1.msra.mxu0 0.0
    %2416 = vmatprep.subr.mxu0 0.0
    %2417 = vmatpush1.msra.mxu0 0.0
    %2418 = vmatprep.subr.mxu0 0.0
    %2419 = vmatpush1.msra.mxu0 0.0
    %2420 = vmatprep.subr.mxu0 0.0
    %2421 = vmatpush1.msra.mxu0 0.0
    %2422 = vmatprep.subr.mxu0 0.0
    %2423 = vmatpush1.msra.mxu0 0.0
    %2424 = vmatprep.subr.mxu0 0.0
    %2425 = vmatpush1.msra.mxu0 0.0
    %2426 = vmatprep.mubr.f32.mxu0 0.0
    %v2427 = vand.u32 %v260, 4294901760
    %2428 = vmatmul.mubr.f32.gmra.mrb[0].mxu0 %v2427
    %v2429 = vpop.f32.mrb[0].mxu0
    %v2430 = vadd.f32 %v2350, %v2429
    %v2431 = vpop.f32.mrb[0].mxu0
    %v2432 = vadd.f32 %v2352, %v2431
    %2433 = vdwg.mxu0
    %2434 = vst [vmem:[#allocation8] sm:$0xff] %v801
    %2435 = vst [vmem:[#allocation8 + $0x8] sm:$0xff] %v803
    %2436 = vst [vmem:[#allocation8 + $0x10] sm:$0xff] %v1344
    %2437 = vst [vmem:[#allocation8 + $0x18] sm:$0xff] %v1346
    %2438 = vst [vmem:[#allocation8 + $0x20] sm:$0xff] %v1887
    %2439 = vst [vmem:[#allocation8 + $0x28] sm:$0xff] %v1889
    %2440 = vst [vmem:[#allocation8 + $0x30] sm:$0xff] %v2430
    %2441 = vst [vmem:[#allocation8 + $0x38] sm:$0xff] %v2432
    // Predicated region
    $region18: #{tpu_custom_call.1} parent=1 // pred_check
      _
    $region19: #{tpu_custom_call.1} parent=1 // pred_check_branch
      %2443 = sbr.rel (0) target = $region21
    $region20: #{tpu_custom_call.1} parent=1 // pred_region
      %s2445 = ssub.s32 4096, 4096
      %2446 = vsyncadd [#allocation4], %s2445
      %s2447 = sshll.u32 [#allocation7], 4
      %s2448 = int_to_ptr.vmem [resolvable:$true] %s2447
      %2453 = dma.vmem_to_hbm [thread:$0]  %s2448, 4096, %s2, [#allocation4], 1024, 1024, 64
    $region21: #{tpu_custom_call.1} parent=1 // pred_fallthru
      _
    // Predicated region
    $region22: #{tpu_custom_call.1} parent=1 // pred_check
      _
    $region23: #{tpu_custom_call.1} parent=1 // pred_check_branch
      %2455 = sbr.rel (0) target = $region25
    $region24: #{tpu_custom_call.1} parent=1 // pred_region
      %s2457 = ssub.s32 1024, 1024
      %2458 = vsyncadd [#allocation9], %s2457
      %s2460 = sshll.u32 [#allocation8], 4
      %s2461 = int_to_ptr.vmem [resolvable:$true] %s2460
      %2463 = dma.vmem_to_hbm [thread:$0]  %s2461, 1024, %s3, [#allocation9]
    $region25: #{tpu_custom_call.1} parent=1 // pred_fallthru
      _
    // Predicated region
    $region26: #{tpu_custom_call.1} parent=1 // pred_check
      _
    $region27: #{tpu_custom_call.1} parent=1 // pred_check_branch
      %2465 = sbr.rel (0) target = $region29
    $region28: #{tpu_custom_call.1} parent=1 // pred_region
      %2466 = dma.done [#allocation4], 4096
    $region29: #{tpu_custom_call.1} parent=1 // pred_fallthru
      _
    // Predicated region
    $region30: #{tpu_custom_call.1} parent=1 // pred_check
      _
    $region31: #{tpu_custom_call.1} parent=1 // pred_check_branch
      %2468 = sbr.rel (0) target = $region33
    $region32: #{tpu_custom_call.1} parent=1 // pred_region
      %2469 = dma.done [#allocation9], 1024
    $region33: #{tpu_custom_call.1} parent=1 // pred_fallthru
      _
    %2470 = vsyncpa [#allocation3], 1
    %2471 = vsyncpa [#allocation6], 1
    %2472 = vsyncpa [#allocation4], 1
    %2473 = vsyncpa [#allocation9], 1

</llo_original>
